<compile_context>
chip_gen: v7x
topology: tpu7x:2x2x1
jax: 0.10.0
libtpu: 0.0.40
codegen_flags: <defaults>
</compile_context>

<pallas_src>
import jax
import jax.numpy as jnp
from jax.experimental import pallas as pl
from jax.experimental.pallas import tpu as pltpu

EPS = 1e-5
USE_BF16_DOT = True


def bn_relu_conv_kernel(x_ref, gb_ref, w_ref, o_ref):
    # x_ref:  [Cin, M]     activations, channel-major (M = N*H*W), f32 (resident across grid)
    # gb_ref: [Cin, 2]     column 0 = gamma, column 1 = beta      (resident across grid)
    # w_ref:  [TCout, Cin] 1x1 conv weight tile (bf16 or f32)
    # o_ref:  [TCout, M]   output tile, f32
    x = x_ref[...]
    inv_m = jnp.float32(1.0 / x.shape[1])  # static trip count -> compile-time reciprocal

    # One-pass batch statistics per channel (PyTorch train-mode BN uses biased variance).
    mean = jnp.sum(x, axis=1, keepdims=True) * inv_m             # [Cin, 1]
    mean_sq = jnp.sum(x * x, axis=1, keepdims=True) * inv_m      # [Cin, 1]
    var = jnp.maximum(mean_sq - mean * mean, 0.0)                # clamp cancellation

    # Fold BN (normalize + affine) into a single per-channel scale/shift.
    gb = gb_ref[...]                                             # [Cin, 2]
    s = gb[:, 0:1] * jax.lax.rsqrt(var + EPS)                    # [Cin, 1]
    b = gb[:, 1:2] - mean * s                                    # [Cin, 1]

    # Normalize + ReLU in f32, then cast only at the matmul boundary.
    y = jnp.maximum(x * s + b, 0.0)                              # [Cin, M]
    y = y.astype(w_ref.dtype)

    # 1x1 conv == matmul over channels on the MXU: [TCout, Cin] @ [Cin, M] -> [TCout, M].
    o_ref[...] = jnp.dot(w_ref[...], y, preferred_element_type=jnp.float32)


def bn_relu_conv1x1(x_nchw, gamma, beta, conv_w):
    """x_nchw: [N, Cin, H, W] f32; gamma/beta: [Cin]; conv_w: [Cout, Cin, 1, 1] (PyTorch layout)."""
    N, C, H, W = x_nchw.shape
    Cout = conv_w.shape[0]
    M = N * H * W

    if N == 1:
        x_cm = x_nchw.reshape(C, M)                              # pure reshape, no transpose
    else:
        # Fallback for N > 1 (not the spec shape): channels must come first for the matmul.
        x_cm = jnp.transpose(x_nchw, (1, 0, 2, 3)).reshape(C, M)

    w = conv_w.reshape(Cout, C)                                  # pure reshape, no transpose
    if USE_BF16_DOT:
        w = w.astype(jnp.bfloat16)

    gb = jnp.stack([gamma, beta], axis=1).astype(jnp.float32)    # [C, 2], single buffer/DMA

    # Tile Cout so the weight DMA pipelines behind compute and (v7x) both TCs are used.
    if Cout % 2 == 0 and (Cout // 2) % 8 == 0:
        t_cout = Cout // 2
    else:
        t_cout = Cout
    grid = (Cout // t_cout,)

    out_cm = pl.pallas_call(
        bn_relu_conv_kernel,
        out_shape=jax.ShapeDtypeStruct((Cout, M), jnp.float32),
        grid=grid,
        in_specs=[
            pl.BlockSpec((C, M), lambda i: (0, 0)),              # x: resident across grid
            pl.BlockSpec((C, 2), lambda i: (0, 0)),              # gamma/beta: resident
            pl.BlockSpec((t_cout, C), lambda i: (i, 0)),         # weight tile
        ],
        out_specs=pl.BlockSpec((t_cout, M), lambda i: (i, 0)),
        compiler_params=pltpu.CompilerParams(
            dimension_semantics=("parallel",)),
    )(x_cm, gb, w)

    if N == 1:
        return out_cm.reshape(1, Cout, H, W)                     # pure reshape back to NCHW
    return jnp.transpose(out_cm.reshape(Cout, N, H, W), (1, 0, 2, 3))


def _reference(x_nchw, gamma, beta, conv_w):
    """Plain-JAX f32 reference with the original module's math (two-pass variance)."""
    C = x_nchw.shape[1]
    Cout = conv_w.shape[0]
    mean = jnp.mean(x_nchw, axis=(0, 2, 3), keepdims=True)
    var = jnp.mean((x_nchw - mean) ** 2, axis=(0, 2, 3), keepdims=True)
    xn = (x_nchw - mean) * jax.lax.rsqrt(var + EPS)
    xn = xn * gamma.reshape(1, C, 1, 1) + beta.reshape(1, C, 1, 1)
    y = jnp.maximum(xn, 0.0)
    return jnp.einsum("oc,nchw->nohw", conv_w.reshape(Cout, C), y)


if __name__ == "__main__":
    # Shapes implied by the module's forward: x115 = [1, 400, 7, 7]
    N, C, H, W = 1, 400, 7, 7
    Cout = 400

    key = jax.random.PRNGKey(0)
    kx, kw = jax.random.split(key)

    x = jax.random.normal(kx, (N, C, H, W), dtype=jnp.float32)

    # Parameters, deterministically initialized (BatchNorm2d default: weight=1, bias=0).
    gamma = jnp.ones((C,), dtype=jnp.float32)
    beta = jnp.zeros((C,), dtype=jnp.float32)
    conv_w = 0.05 * jax.random.normal(kw, (Cout, C, 1, 1), dtype=jnp.float32)

    out = bn_relu_conv1x1(x, gamma, beta, conv_w)
    jax.block_until_ready(out)

    assert out.shape == (N, Cout, H, W), out.shape
    assert jnp.isfinite(out).all()

    ref = _reference(x, gamma, beta, conv_w)
    # bf16 matmul operands => ~0.4% relative error vs. the f32 reference.
    tol = 3e-2 if USE_BF16_DOT else 1e-3
    assert jnp.allclose(out, ref, atol=tol, rtol=tol), float(jnp.max(jnp.abs(out - ref)))

    print("KERNEL_OK")
</pallas_src>

<mosaic_0001>
module attributes {stable_mosaic.version = 11 : i64} {
  func.func @bn_relu_conv_kernel(%arg0: i32, %arg1: memref<400x49xf32, #tpu.memory_space<vmem>>, %arg2: memref<400x2xf32, #tpu.memory_space<vmem>>, %arg3: memref<200x400xbf16, #tpu.memory_space<vmem>>, %arg4: memref<200x49xf32, #tpu.memory_space<vmem>>) attributes {dimension_semantics = [#tpu.dimension_semantics<parallel>], iteration_bounds = array<i64: 2>, scalar_prefetch = 0 : i64, scratch_operands = 0 : i64, tpu.core_type = #tpu.core_type<tc>, window_params = [{pipeline_mode = #tpu.pipeline_mode<synchronous>, transform_indices = @transform_0, window_bounds = array<i64: 400, 49>}, {pipeline_mode = #tpu.pipeline_mode<synchronous>, transform_indices = @transform_1, window_bounds = array<i64: 400, 2>}, {transform_indices = @transform_2, window_bounds = array<i64: 200, 400>}, {transform_indices = @transform_3, window_bounds = array<i64: 200, 49>}]} {
    %c0 = arith.constant 0 : index
    %c0_0 = arith.constant 0 : index
    %0 = vector.load %arg1[%c0, %c0_0] : memref<400x49xf32, #tpu.memory_space<vmem>>, vector<400x49xf32>
    %cst = arith.constant dense<0.000000e+00> : vector<400xf32>
    %1 = vector.multi_reduction <add>, %0, %cst [1] : vector<400x49xf32> to vector<400xf32>
    %2 = vector.shape_cast %1 : vector<400xf32> to vector<400x1xf32>
    %cst_1 = arith.constant 0.0204081628 : f32
    %3 = vector.broadcast %cst_1 : f32 to vector<400x1xf32>
    %4 = arith.mulf %2, %3 : vector<400x1xf32>
    %5 = arith.mulf %0, %0 : vector<400x49xf32>
    %cst_2 = arith.constant dense<0.000000e+00> : vector<400xf32>
    %6 = vector.multi_reduction <add>, %5, %cst_2 [1] : vector<400x49xf32> to vector<400xf32>
    %7 = vector.shape_cast %6 : vector<400xf32> to vector<400x1xf32>
    %cst_3 = arith.constant 0.0204081628 : f32
    %8 = vector.broadcast %cst_3 : f32 to vector<400x1xf32>
    %9 = arith.mulf %7, %8 : vector<400x1xf32>
    %10 = arith.mulf %4, %4 : vector<400x1xf32>
    %11 = arith.subf %9, %10 : vector<400x1xf32>
    %cst_4 = arith.constant 0.000000e+00 : f32
    %12 = vector.broadcast %cst_4 : f32 to vector<400x1xf32>
    %13 = arith.maximumf %11, %12 : vector<400x1xf32>
    %c0_5 = arith.constant 0 : index
    %c0_6 = arith.constant 0 : index
    %14 = vector.load %arg2[%c0_5, %c0_6] : memref<400x2xf32, #tpu.memory_space<vmem>>, vector<400x2xf32>
    %15 = vector.extract_strided_slice %14 {offsets = [0, 0], sizes = [400, 1], strides = [1, 1]} : vector<400x2xf32> to vector<400x1xf32>
    %cst_7 = arith.constant 9.99999974E-6 : f32
    %16 = vector.broadcast %cst_7 : f32 to vector<400x1xf32>
    %17 = arith.addf %13, %16 : vector<400x1xf32>
    %18 = math.rsqrt %17 : vector<400x1xf32>
    %19 = arith.mulf %15, %18 : vector<400x1xf32>
    %20 = vector.extract_strided_slice %14 {offsets = [0, 1], sizes = [400, 1], strides = [1, 1]} : vector<400x2xf32> to vector<400x1xf32>
    %21 = arith.mulf %4, %19 : vector<400x1xf32>
    %22 = arith.subf %20, %21 : vector<400x1xf32>
    %23 = vector.broadcast %19 : vector<400x1xf32> to vector<400x49xf32>
    %24 = arith.mulf %0, %23 : vector<400x49xf32>
    %25 = vector.broadcast %22 : vector<400x1xf32> to vector<400x49xf32>
    %26 = arith.addf %24, %25 : vector<400x49xf32>
    %cst_8 = arith.constant 0.000000e+00 : f32
    %27 = vector.broadcast %cst_8 : f32 to vector<400x49xf32>
    %28 = arith.maximumf %26, %27 : vector<400x49xf32>
    %29 = arith.truncf %28 : vector<400x49xf32> to vector<400x49xbf16>
    %c0_9 = arith.constant 0 : index
    %c0_10 = arith.constant 0 : index
    %30 = vector.load %arg3[%c0_9, %c0_10] : memref<200x400xbf16, #tpu.memory_space<vmem>>, vector<200x400xbf16>
    %cst_11 = arith.constant dense<0.000000e+00> : vector<200x49xf32>
    %31 = tpu.matmul %30, %29, %cst_11 {dimension_numbers = #tpu.dot_dimension_numbers<[1], [0], [0], [1], [0, 0, 1, 1], [], []>} : vector<200x400xbf16>, vector<400x49xbf16>, vector<200x49xf32> -> vector<200x49xf32>
    %c0_12 = arith.constant 0 : index
    %c0_13 = arith.constant 0 : index
    %32 = vector.load %arg4[%c0_12, %c0_13] : memref<200x49xf32, #tpu.memory_space<vmem>>, vector<200x49xf32>
    tpu.vector_store %arg4[%c0_12, %c0_13], %31 {strides = array<i32>} : memref<200x49xf32, #tpu.memory_space<vmem>>, vector<200x49xf32>,
    return
  }
  func.func @transform_0(%arg0: i32) -> (i32, i32) {
    %c0_i32 = arith.constant 0 : i32
    %c0_i32_0 = arith.constant 0 : i32
    %c0_i32_1 = arith.constant 0 : i32
    return %c0_i32, %c0_i32_0 : i32, i32
  }
  func.func @transform_1(%arg0: i32) -> (i32, i32) {
    %c0_i32 = arith.constant 0 : i32
    %c0_i32_0 = arith.constant 0 : i32
    %c0_i32_1 = arith.constant 0 : i32
    return %c0_i32, %c0_i32_0 : i32, i32
  }
  func.func @transform_2(%arg0: i32) -> (i32, i32) {
    %c0_i32 = arith.constant 0 : i32
    %c0_i32_0 = arith.constant 0 : i32
    return %arg0, %c0_i32 : i32, i32
  }
  func.func @transform_3(%arg0: i32) -> (i32, i32) {
    %c0_i32 = arith.constant 0 : i32
    %c0_i32_0 = arith.constant 0 : i32
    return %arg0, %c0_i32 : i32, i32
  }
}

</mosaic_0001>

<llo_original>
// kernel: tpu_custom_call.1
$region0: #{tpu_custom_call.1}
  #allocation0 [shape = 'u32[]', space=smem, size = 0x4, offset = 0x4, fixed_abs, tag = 'smem constant byte address 0x4 - core index']
  #allocation1 [shape = 'u32[144,128]{1,0:T(1,128)}', space=vmem, size = 0x12000, scoped, tag = 'internal scratch']
  %s0 = inlined_call_operand.vmem [shape: f32[400,49], index: 0, kind: input, shape index: {}]
  %s1 = inlined_call_operand.vmem [shape: f32[400,2], index: 1, kind: input, shape index: {}]
  %s2 = inlined_call_operand.vmem [shape: bf16[400,400], index: 2, kind: input, shape index: {}]
  %s3 = inlined_call_operand.vmem [shape: f32[400,49], index: 3, kind: output, shape index: {}]
  %s4 = sld [smem:[#allocation0]]
  $region45: #{tpu_custom_call.1} parent=0
    _
  %s6 = ssub.s32 1, %s4
  %s7 = scalar_select 0, %s6, %s4
  loop: start=0, step=1, limit=4
  $region2: #{tpu_custom_call.1} parent=0 // loop_pre_header
    _
  $region3: #{tpu_custom_call.1} parent=0 // loop_header
    %s9 = sphi 0, %s13
    %p10 = scmp.ge.s32.totalorder %s9, 4
    %s17 = sphi 0, %s17
    %s19 = sphi 0, %s17
    %s20 = sphi 0, %s19
    %s34 = sphi 0, %s20
    %s38 = sphi 0, %s38
    %s40 = sphi 0, %s38
    %s41 = sphi 0, %s40
    %s55 = sphi 0, %s41
    %s61 = sphi 0, %s63
    %s64 = sphi 0, %s61
    %s65 = sphi 0, %s64
    %s81 = sphi 0, %s65
    %s87 = sphi 0, %s89
    %s90 = sphi 0, %s87
    %s91 = sphi 0, %s90
    %s107 = sphi 0, %s91
  $region4: #{tpu_custom_call.1} parent=0 // loop_header_branch
    %12 = sbr.rel (%p10) target = $region8
  $region5: #{tpu_custom_call.1} parent=0 // loop_body
    %s14 = ssub.s32 %s9, 1
    %s15 = ssub.s32 %s9, 2
    %s16 = sadd.s32 %s9, 1
    %s18 = sadd.s32 %s17, 1
    %p21 = scmp.eq.s32.totalorder %s9, 1
    %p22 = scmp.ne.s32.totalorder %s17, %s19
    %p23 = scmp.eq.s32.totalorder %s9, 0
    %p24 = por %p22, %p23
    %p25 = scmp.ne.s32.totalorder %s17, %s19
    %p26 = scmp.eq.s32.totalorder %s14, 1
    %p27 = por %p25, %p26
    %p28 = scmp.ne.s32.totalorder %s19, %s20
    %p29 = scmp.eq.s32.totalorder %s14, 0
    %p30 = por %p28, %p29
    %p31 = scmp.ne.s32.totalorder %s19, %s20
    %p32 = scmp.eq.s32.totalorder %s15, 1
    %p33 = por %p31, %p32
    %p35 = scmp.ne.s32.totalorder %s20, %s34
    %p36 = scmp.eq.s32.totalorder %s15, 0
    %p37 = por %p35, %p36
    %s39 = sadd.s32 %s38, 1
    %p42 = scmp.eq.s32.totalorder %s9, 1
    %p43 = scmp.ne.s32.totalorder %s38, %s40
    %p44 = scmp.eq.s32.totalorder %s9, 0
    %p45 = por %p43, %p44
    %p46 = scmp.ne.s32.totalorder %s38, %s40
    %p47 = scmp.eq.s32.totalorder %s14, 1
    %p48 = por %p46, %p47
    %p49 = scmp.ne.s32.totalorder %s40, %s41
    %p50 = scmp.eq.s32.totalorder %s14, 0
    %p51 = por %p49, %p50
    %p52 = scmp.ne.s32.totalorder %s40, %s41
    %p53 = scmp.eq.s32.totalorder %s15, 1
    %p54 = por %p52, %p53
    %p56 = scmp.ne.s32.totalorder %s41, %s55
    %p57 = scmp.eq.s32.totalorder %s15, 0
    %p58 = por %p56, %p57
    %s59 = ssub.s32 %s9, %s16
    %p60 = scmp.eq.s32.totalorder %s59, 0
    %s62 = sadd.s32 %s61, 1
    %s63 = scalar_select %p60, %s61, %s62
    %p66 = pneg %p60
    %p67 = scmp.eq.s32.totalorder %s9, 1
    %p68 = por %p66, %p67
    %p69 = scmp.ne.s32.totalorder %s61, %s64
    %p70 = scmp.eq.s32.totalorder %s9, 0
    %p71 = por %p69, %p70
    %p72 = scmp.ne.s32.totalorder %s61, %s64
    %p73 = scmp.eq.s32.totalorder %s14, 1
    %p74 = por %p72, %p73
    %p75 = scmp.ne.s32.totalorder %s64, %s65
    %p76 = scmp.eq.s32.totalorder %s14, 0
    %p77 = por %p75, %p76
    %p78 = scmp.ne.s32.totalorder %s64, %s65
    %p79 = scmp.eq.s32.totalorder %s15, 1
    %p80 = por %p78, %p79
    %p82 = scmp.ne.s32.totalorder %s65, %s81
    %p83 = scmp.eq.s32.totalorder %s15, 0
    %p84 = por %p82, %p83
    %s85 = ssub.s32 %s9, %s16
    %p86 = scmp.eq.s32.totalorder %s85, 0
    %s88 = sadd.s32 %s87, 1
    %s89 = scalar_select %p86, %s87, %s88
    %p92 = pneg %p86
    %p93 = scmp.eq.s32.totalorder %s9, 1
    %p94 = por %p92, %p93
    %p95 = scmp.ne.s32.totalorder %s87, %s90
    %p96 = scmp.eq.s32.totalorder %s9, 0
    %p97 = por %p95, %p96
    %p98 = scmp.ne.s32.totalorder %s87, %s90
    %p99 = scmp.eq.s32.totalorder %s14, 1
    %p100 = por %p98, %p99
    %p101 = scmp.ne.s32.totalorder %s90, %s91
    %p102 = scmp.eq.s32.totalorder %s14, 0
    %p103 = por %p101, %p102
    %p104 = scmp.ne.s32.totalorder %s90, %s91
    %p105 = scmp.eq.s32.totalorder %s15, 1
    %p106 = por %p104, %p105
    %p108 = scmp.ne.s32.totalorder %s91, %s107
    %p109 = scmp.eq.s32.totalorder %s15, 0
    %p110 = por %p108, %p109
    %p111 = scmp.le.s32.totalorder 1, %s9
    %p112 = scmp.lt.s32.totalorder %s9, 3
    %p113 = pnand %p111, %p112
    %p114 = pneg %p113
    // Predicated region
    $region9: #{tpu_custom_call.1} parent=5 // pred_check
      _
    $region10: #{tpu_custom_call.1} parent=5 // pred_check_branch
      %116 = sbr.rel (%p113) target = $region12
    $region11: #{tpu_custom_call.1} parent=5 // pred_region
      %s117 = ssub.s32 %s9, 1
      // Predicated region
      $region13: #{tpu_custom_call.1} parent=11 // pred_check
        %p118 = pneg %p30
      $region14: #{tpu_custom_call.1} parent=11 // pred_check_branch
        %120 = sbr.rel (%p118) target = $region16
      $region15: #{tpu_custom_call.1} parent=11 // pred_region
        _
      $region16: #{tpu_custom_call.1} parent=11 // pred_fallthru
        _
      // Predicated region
      $region17: #{tpu_custom_call.1} parent=11 // pred_check
        %p121 = pneg %p51
      $region18: #{tpu_custom_call.1} parent=11 // pred_check_branch
        %123 = sbr.rel (%p121) target = $region20
      $region19: #{tpu_custom_call.1} parent=11 // pred_region
        _
      $region20: #{tpu_custom_call.1} parent=11 // pred_fallthru
        _
    $region12: #{tpu_custom_call.1} parent=5 // pred_fallthru
      _
    %p124 = scmp.lt.s32.totalorder %s9, 2
    // Predicated region
    $region21: #{tpu_custom_call.1} parent=5 // pred_check
      %p125 = pneg %p124
    $region22: #{tpu_custom_call.1} parent=5 // pred_check_branch
      %127 = sbr.rel (%p125) target = $region24
    $region23: #{tpu_custom_call.1} parent=5 // pred_region
      // Predicated region
      $region25: #{tpu_custom_call.1} parent=23 // pred_check
        %p128 = pneg %p71
      $region26: #{tpu_custom_call.1} parent=23 // pred_check_branch
        %130 = sbr.rel (%p128) target = $region28
      $region27: #{tpu_custom_call.1} parent=23 // pred_region
        %s131 = smul.u32 25, %s9
        %p132 = scmp.lt.s32.totalorder %s131, 49
        %s133 = scalar_select %p132, %s131, 49
        %s134 = smul.addr %s133, 4
        %s135 = smul.addr %s134, 4
        %s136 = scalar_lea.vmem %s2, %s135
        %s137 = smul.u32 25, %s9
      $region28: #{tpu_custom_call.1} parent=23 // pred_fallthru
        _
    $region24: #{tpu_custom_call.1} parent=5 // pred_fallthru
      _
    %p138 = scmp.le.s32.totalorder 1, %s9
    %p139 = scmp.lt.s32.totalorder %s9, 3
    %p140 = pnand %p138, %p139
    %p141 = pneg %p140
    // Predicated region
    $region29: #{tpu_custom_call.1} parent=5 // pred_check
      _
    $region30: #{tpu_custom_call.1} parent=5 // pred_check_branch
      %143 = sbr.rel (%p140) target = $region32
    $region31: #{tpu_custom_call.1} parent=5 // pred_region
      %s144 = ssub.s32 %s9, 1
      %p145 = pneg %p30
      %p146 = pneg %p27
      %p147 = pneg %p51
      %p148 = pneg %p48
      %s149 = smul.u32 25, %s14
      %p150 = scmp.lt.s32.totalorder %s149, 49
      %s151 = scalar_select %p150, %s149, 49
      %s152 = smul.addr %s151, 4
      %s153 = smul.addr %s152, 4
      %s154 = scalar_lea.vmem %s2, %s153
      %p155 = pneg %p77
      %p156 = pneg %p74
      %p157 = pneg %p103
      %p158 = pneg %p100
      %s159 = smul.u32 25, %s14
      %p160 = scmp.lt.s32.totalorder %s159, 49
      %s161 = scalar_select %p160, %s159, 49
      %s162 = smul.addr %s161, 8
      %s163 = scalar_lea.vmem %s3, %s162
      %s164 = smul.u32 25, %s14
      %p165 = scmp.lt.s32.totalorder %s164, 49
      %s166 = scalar_select %p165, %s164, 49
      %s167 = smul.addr %s166, 4
      %s168 = smul.addr %s167, 4
      %s169 = scalar_lea.vmem %s2, %s168
      %s170 = smul.u32 25, %s14
      %s171 = smul.u32 25, %s14
      %p172 = scmp.lt.s32.totalorder %s171, 49
      %s173 = scalar_select %p172, %s171, 49
      %s174 = smul.addr %s173, 8
      %s175 = scalar_lea.vmem %s3, %s174
      %s176 = smul.u32 25, %s14
      %v178 = vld [vmem:[%s0] sm:$0xff]
      %v179 = vld [vmem:[%s0 + $0x8] sm:$0xff]
      %v180 = vld [vmem:[%s0 + $0x10] sm:$0xff]
      %v181 = vld [vmem:[%s0 + $0x18] sm:$0xff]
      %v182 = vld [vmem:[%s0 + $0x20] sm:$0xff]
      %v183 = vld [vmem:[%s0 + $0x28] sm:$0xff]
      %v184 = vld [vmem:[%s0 + $0x30] sm:$0xff]
      %v185 = vld [vmem:[%s0 + $0x38] sm:$0xff]
      %v186 = vld [vmem:[%s0 + $0x40] sm:$0xff]
      %v187 = vld [vmem:[%s0 + $0x48] sm:$0xff]
      %v188 = vld [vmem:[%s0 + $0x50] sm:$0xff]
      %v189 = vld [vmem:[%s0 + $0x58] sm:$0xff]
      %v190 = vld [vmem:[%s0 + $0x60] sm:$0xff]
      %v191 = vld [vmem:[%s0 + $0x68] sm:$0xff]
      %v192 = vld [vmem:[%s0 + $0x70] sm:$0xff]
      %v193 = vld [vmem:[%s0 + $0x78] sm:$0xff]
      %v194 = vld [vmem:[%s0 + $0x80] sm:$0xff]
      %v195 = vld [vmem:[%s0 + $0x88] sm:$0xff]
      %v196 = vld [vmem:[%s0 + $0x90] sm:$0xff]
      %v197 = vld [vmem:[%s0 + $0x98] sm:$0xff]
      %v198 = vld [vmem:[%s0 + $0xa0] sm:$0xff]
      %v199 = vld [vmem:[%s0 + $0xa8] sm:$0xff]
      %v200 = vld [vmem:[%s0 + $0xb0] sm:$0xff]
      %v201 = vld [vmem:[%s0 + $0xb8] sm:$0xff]
      %v202 = vld [vmem:[%s0 + $0xc0] sm:$0xff]
      %v203 = vld [vmem:[%s0 + $0xc8] sm:$0xff]
      %v204 = vld [vmem:[%s0 + $0xd0] sm:$0xff]
      %v205 = vld [vmem:[%s0 + $0xd8] sm:$0xff]
      %v206 = vld [vmem:[%s0 + $0xe0] sm:$0xff]
      %v207 = vld [vmem:[%s0 + $0xe8] sm:$0xff]
      %v208 = vld [vmem:[%s0 + $0xf0] sm:$0xff]
      %v209 = vld [vmem:[%s0 + $0xf8] sm:$0xff]
      %v210 = vld [vmem:[%s0 + $0x100] sm:$0xff]
      %v211 = vld [vmem:[%s0 + $0x108] sm:$0xff]
      %v212 = vld [vmem:[%s0 + $0x110] sm:$0xff]
      %v213 = vld [vmem:[%s0 + $0x118] sm:$0xff]
      %v214 = vld [vmem:[%s0 + $0x120] sm:$0xff]
      %v215 = vld [vmem:[%s0 + $0x128] sm:$0xff]
      %v216 = vld [vmem:[%s0 + $0x130] sm:$0xff]
      %v217 = vld [vmem:[%s0 + $0x138] sm:$0xff]
      %v218 = vld [vmem:[%s0 + $0x140] sm:$0xff]
      %v219 = vld [vmem:[%s0 + $0x148] sm:$0xff]
      %v220 = vld [vmem:[%s0 + $0x150] sm:$0xff]
      %v221 = vld [vmem:[%s0 + $0x158] sm:$0xff]
      %v222 = vld [vmem:[%s0 + $0x160] sm:$0xff]
      %v223 = vld [vmem:[%s0 + $0x168] sm:$0xff]
      %v224 = vld [vmem:[%s0 + $0x170] sm:$0xff]
      %v225 = vld [vmem:[%s0 + $0x178] sm:$0xff]
      %v226 = vld [vmem:[%s0 + $0x180] sm:$0xff]
      %v227 = vld [vmem:[%s0 + $0x188] sm:$0xff]
      %vm228 = vcmask 400384
      %v229 = vsel %vm228, %v178, 0.0
      %230 = vadd.xlane.f32.xlu0 %v229
      %v231 = vpop.xlane.xlu0 %230
      %v232 = vsel %vm228, %v179, 0.0
      %233 = vadd.xlane.f32.xlu0 %v232
      %v234 = vpop.xlane.xlu0 %233
      %v235 = vsel %vm228, %v180, 0.0
      %236 = vadd.xlane.f32.xlu0 %v235
      %v237 = vpop.xlane.xlu0 %236
      %v238 = vsel %vm228, %v181, 0.0
      %239 = vadd.xlane.f32.xlu0 %v238
      %v240 = vpop.xlane.xlu0 %239
      %v241 = vsel %vm228, %v182, 0.0
      %242 = vadd.xlane.f32.xlu0 %v241
      %v243 = vpop.xlane.xlu0 %242
      %v244 = vsel %vm228, %v183, 0.0
      %245 = vadd.xlane.f32.xlu0 %v244
      %v246 = vpop.xlane.xlu0 %245
      %v247 = vsel %vm228, %v184, 0.0
      %248 = vadd.xlane.f32.xlu0 %v247
      %v249 = vpop.xlane.xlu0 %248
      %v250 = vsel %vm228, %v185, 0.0
      %251 = vadd.xlane.f32.xlu0 %v250
      %v252 = vpop.xlane.xlu0 %251
      %v253 = vsel %vm228, %v186, 0.0
      %254 = vadd.xlane.f32.xlu0 %v253
      %v255 = vpop.xlane.xlu0 %254
      %v256 = vsel %vm228, %v187, 0.0
      %257 = vadd.xlane.f32.xlu0 %v256
      %v258 = vpop.xlane.xlu0 %257
      %v259 = vsel %vm228, %v188, 0.0
      %260 = vadd.xlane.f32.xlu0 %v259
      %v261 = vpop.xlane.xlu0 %260
      %v262 = vsel %vm228, %v189, 0.0
      %263 = vadd.xlane.f32.xlu0 %v262
      %v264 = vpop.xlane.xlu0 %263
      %v265 = vsel %vm228, %v190, 0.0
      %266 = vadd.xlane.f32.xlu0 %v265
      %v267 = vpop.xlane.xlu0 %266
      %v268 = vsel %vm228, %v191, 0.0
      %269 = vadd.xlane.f32.xlu0 %v268
      %v270 = vpop.xlane.xlu0 %269
      %v271 = vsel %vm228, %v192, 0.0
      %272 = vadd.xlane.f32.xlu0 %v271
      %v273 = vpop.xlane.xlu0 %272
      %v274 = vsel %vm228, %v193, 0.0
      %275 = vadd.xlane.f32.xlu0 %v274
      %v276 = vpop.xlane.xlu0 %275
      %v277 = vsel %vm228, %v194, 0.0
      %278 = vadd.xlane.f32.xlu0 %v277
      %v279 = vpop.xlane.xlu0 %278
      %v280 = vsel %vm228, %v195, 0.0
      %281 = vadd.xlane.f32.xlu0 %v280
      %v282 = vpop.xlane.xlu0 %281
      %v283 = vsel %vm228, %v196, 0.0
      %284 = vadd.xlane.f32.xlu0 %v283
      %v285 = vpop.xlane.xlu0 %284
      %v286 = vsel %vm228, %v197, 0.0
      %287 = vadd.xlane.f32.xlu0 %v286
      %v288 = vpop.xlane.xlu0 %287
      %v289 = vsel %vm228, %v198, 0.0
      %290 = vadd.xlane.f32.xlu0 %v289
      %v291 = vpop.xlane.xlu0 %290
      %v292 = vsel %vm228, %v199, 0.0
      %293 = vadd.xlane.f32.xlu0 %v292
      %v294 = vpop.xlane.xlu0 %293
      %v295 = vsel %vm228, %v200, 0.0
      %296 = vadd.xlane.f32.xlu0 %v295
      %v297 = vpop.xlane.xlu0 %296
      %v298 = vsel %vm228, %v201, 0.0
      %299 = vadd.xlane.f32.xlu0 %v298
      %v300 = vpop.xlane.xlu0 %299
      %v301 = vsel %vm228, %v202, 0.0
      %302 = vadd.xlane.f32.xlu0 %v301
      %v303 = vpop.xlane.xlu0 %302
      %v304 = vsel %vm228, %v203, 0.0
      %305 = vadd.xlane.f32.xlu0 %v304
      %v306 = vpop.xlane.xlu0 %305
      %v307 = vsel %vm228, %v204, 0.0
      %308 = vadd.xlane.f32.xlu0 %v307
      %v309 = vpop.xlane.xlu0 %308
      %v310 = vsel %vm228, %v205, 0.0
      %311 = vadd.xlane.f32.xlu0 %v310
      %v312 = vpop.xlane.xlu0 %311
      %v313 = vsel %vm228, %v206, 0.0
      %314 = vadd.xlane.f32.xlu0 %v313
      %v315 = vpop.xlane.xlu0 %314
      %v316 = vsel %vm228, %v207, 0.0
      %317 = vadd.xlane.f32.xlu0 %v316
      %v318 = vpop.xlane.xlu0 %317
      %v319 = vsel %vm228, %v208, 0.0
      %320 = vadd.xlane.f32.xlu0 %v319
      %v321 = vpop.xlane.xlu0 %320
      %v322 = vsel %vm228, %v209, 0.0
      %323 = vadd.xlane.f32.xlu0 %v322
      %v324 = vpop.xlane.xlu0 %323
      %v325 = vsel %vm228, %v210, 0.0
      %326 = vadd.xlane.f32.xlu0 %v325
      %v327 = vpop.xlane.xlu0 %326
      %v328 = vsel %vm228, %v211, 0.0
      %329 = vadd.xlane.f32.xlu0 %v328
      %v330 = vpop.xlane.xlu0 %329
      %v331 = vsel %vm228, %v212, 0.0
      %332 = vadd.xlane.f32.xlu0 %v331
      %v333 = vpop.xlane.xlu0 %332
      %v334 = vsel %vm228, %v213, 0.0
      %335 = vadd.xlane.f32.xlu0 %v334
      %v336 = vpop.xlane.xlu0 %335
      %v337 = vsel %vm228, %v214, 0.0
      %338 = vadd.xlane.f32.xlu0 %v337
      %v339 = vpop.xlane.xlu0 %338
      %v340 = vsel %vm228, %v215, 0.0
      %341 = vadd.xlane.f32.xlu0 %v340
      %v342 = vpop.xlane.xlu0 %341
      %v343 = vsel %vm228, %v216, 0.0
      %344 = vadd.xlane.f32.xlu0 %v343
      %v345 = vpop.xlane.xlu0 %344
      %v346 = vsel %vm228, %v217, 0.0
      %347 = vadd.xlane.f32.xlu0 %v346
      %v348 = vpop.xlane.xlu0 %347
      %v349 = vsel %vm228, %v218, 0.0
      %350 = vadd.xlane.f32.xlu0 %v349
      %v351 = vpop.xlane.xlu0 %350
      %v352 = vsel %vm228, %v219, 0.0
      %353 = vadd.xlane.f32.xlu0 %v352
      %v354 = vpop.xlane.xlu0 %353
      %v355 = vsel %vm228, %v220, 0.0
      %356 = vadd.xlane.f32.xlu0 %v355
      %v357 = vpop.xlane.xlu0 %356
      %v358 = vsel %vm228, %v221, 0.0
      %359 = vadd.xlane.f32.xlu0 %v358
      %v360 = vpop.xlane.xlu0 %359
      %v361 = vsel %vm228, %v222, 0.0
      %362 = vadd.xlane.f32.xlu0 %v361
      %v363 = vpop.xlane.xlu0 %362
      %v364 = vsel %vm228, %v223, 0.0
      %365 = vadd.xlane.f32.xlu0 %v364
      %v366 = vpop.xlane.xlu0 %365
      %v367 = vsel %vm228, %v224, 0.0
      %368 = vadd.xlane.f32.xlu0 %v367
      %v369 = vpop.xlane.xlu0 %368
      %v370 = vsel %vm228, %v225, 0.0
      %371 = vadd.xlane.f32.xlu0 %v370
      %v372 = vpop.xlane.xlu0 %371
      %v373 = vsel %vm228, %v226, 0.0
      %374 = vadd.xlane.f32.xlu0 %v373
      %v375 = vpop.xlane.xlu0 %374
      %v376 = vsel %vm228, %v227, 0.0
      %377 = vadd.xlane.f32.xlu0 %v376
      %v378 = vpop.xlane.xlu0 %377
      %v379 = vmul.f32 %v231, 0.020408163
      %v380 = vmul.f32 %v234, 0.020408163
      %v381 = vmul.f32 %v237, 0.020408163
      %v382 = vmul.f32 %v240, 0.020408163
      %v383 = vmul.f32 %v243, 0.020408163
      %v384 = vmul.f32 %v246, 0.020408163
      %v385 = vmul.f32 %v249, 0.020408163
      %v386 = vmul.f32 %v252, 0.020408163
      %v387 = vmul.f32 %v255, 0.020408163
      %v388 = vmul.f32 %v258, 0.020408163
      %v389 = vmul.f32 %v261, 0.020408163
      %v390 = vmul.f32 %v264, 0.020408163
      %v391 = vmul.f32 %v267, 0.020408163
      %v392 = vmul.f32 %v270, 0.020408163
      %v393 = vmul.f32 %v273, 0.020408163
      %v394 = vmul.f32 %v276, 0.020408163
      %v395 = vmul.f32 %v279, 0.020408163
      %v396 = vmul.f32 %v282, 0.020408163
      %v397 = vmul.f32 %v285, 0.020408163
      %v398 = vmul.f32 %v288, 0.020408163
      %v399 = vmul.f32 %v291, 0.020408163
      %v400 = vmul.f32 %v294, 0.020408163
      %v401 = vmul.f32 %v297, 0.020408163
      %v402 = vmul.f32 %v300, 0.020408163
      %v403 = vmul.f32 %v303, 0.020408163
      %v404 = vmul.f32 %v306, 0.020408163
      %v405 = vmul.f32 %v309, 0.020408163
      %v406 = vmul.f32 %v312, 0.020408163
      %v407 = vmul.f32 %v315, 0.020408163
      %v408 = vmul.f32 %v318, 0.020408163
      %v409 = vmul.f32 %v321, 0.020408163
      %v410 = vmul.f32 %v324, 0.020408163
      %v411 = vmul.f32 %v327, 0.020408163
      %v412 = vmul.f32 %v330, 0.020408163
      %v413 = vmul.f32 %v333, 0.020408163
      %v414 = vmul.f32 %v336, 0.020408163
      %v415 = vmul.f32 %v339, 0.020408163
      %v416 = vmul.f32 %v342, 0.020408163
      %v417 = vmul.f32 %v345, 0.020408163
      %v418 = vmul.f32 %v348, 0.020408163
      %v419 = vmul.f32 %v351, 0.020408163
      %v420 = vmul.f32 %v354, 0.020408163
      %v421 = vmul.f32 %v357, 0.020408163
      %v422 = vmul.f32 %v360, 0.020408163
      %v423 = vmul.f32 %v363, 0.020408163
      %v424 = vmul.f32 %v366, 0.020408163
      %v425 = vmul.f32 %v369, 0.020408163
      %v426 = vmul.f32 %v372, 0.020408163
      %v427 = vmul.f32 %v375, 0.020408163
      %v428 = vmul.f32 %v378, 0.020408163
      %v429 = vmul.f32 %v178, %v178
      %v430 = vmul.f32 %v179, %v179
      %v431 = vmul.f32 %v180, %v180
      %v432 = vmul.f32 %v181, %v181
      %v433 = vmul.f32 %v182, %v182
      %v434 = vmul.f32 %v183, %v183
      %v435 = vmul.f32 %v184, %v184
      %v436 = vmul.f32 %v185, %v185
      %v437 = vmul.f32 %v186, %v186
      %v438 = vmul.f32 %v187, %v187
      %v439 = vmul.f32 %v188, %v188
      %v440 = vmul.f32 %v189, %v189
      %v441 = vmul.f32 %v190, %v190
      %v442 = vmul.f32 %v191, %v191
      %v443 = vmul.f32 %v192, %v192
      %v444 = vmul.f32 %v193, %v193
      %v445 = vmul.f32 %v194, %v194
      %v446 = vmul.f32 %v195, %v195
      %v447 = vmul.f32 %v196, %v196
      %v448 = vmul.f32 %v197, %v197
      %v449 = vmul.f32 %v198, %v198
      %v450 = vmul.f32 %v199, %v199
      %v451 = vmul.f32 %v200, %v200
      %v452 = vmul.f32 %v201, %v201
      %v453 = vmul.f32 %v202, %v202
      %v454 = vmul.f32 %v203, %v203
      %v455 = vmul.f32 %v204, %v204
      %v456 = vmul.f32 %v205, %v205
      %v457 = vmul.f32 %v206, %v206
      %v458 = vmul.f32 %v207, %v207
      %v459 = vmul.f32 %v208, %v208
      %v460 = vmul.f32 %v209, %v209
      %v461 = vmul.f32 %v210, %v210
      %v462 = vmul.f32 %v211, %v211
      %v463 = vmul.f32 %v212, %v212
      %v464 = vmul.f32 %v213, %v213
      %v465 = vmul.f32 %v214, %v214
      %v466 = vmul.f32 %v215, %v215
      %v467 = vmul.f32 %v216, %v216
      %v468 = vmul.f32 %v217, %v217
      %v469 = vmul.f32 %v218, %v218
      %v470 = vmul.f32 %v219, %v219
      %v471 = vmul.f32 %v220, %v220
      %v472 = vmul.f32 %v221, %v221
      %v473 = vmul.f32 %v222, %v222
      %v474 = vmul.f32 %v223, %v223
      %v475 = vmul.f32 %v224, %v224
      %v476 = vmul.f32 %v225, %v225
      %v477 = vmul.f32 %v226, %v226
      %v478 = vmul.f32 %v227, %v227
      %v479 = vsel %vm228, %v429, 0.0
      %480 = vadd.xlane.f32.xlu0 %v479
      %v481 = vpop.xlane.xlu0 %480
      %v482 = vsel %vm228, %v430, 0.0
      %483 = vadd.xlane.f32.xlu0 %v482
      %v484 = vpop.xlane.xlu0 %483
      %v485 = vsel %vm228, %v431, 0.0
      %486 = vadd.xlane.f32.xlu0 %v485
      %v487 = vpop.xlane.xlu0 %486
      %v488 = vsel %vm228, %v432, 0.0
      %489 = vadd.xlane.f32.xlu0 %v488
      %v490 = vpop.xlane.xlu0 %489
      %v491 = vsel %vm228, %v433, 0.0
      %492 = vadd.xlane.f32.xlu0 %v491
      %v493 = vpop.xlane.xlu0 %492
      %v494 = vsel %vm228, %v434, 0.0
      %495 = vadd.xlane.f32.xlu0 %v494
      %v496 = vpop.xlane.xlu0 %495
      %v497 = vsel %vm228, %v435, 0.0
      %498 = vadd.xlane.f32.xlu0 %v497
      %v499 = vpop.xlane.xlu0 %498
      %v500 = vsel %vm228, %v436, 0.0
      %501 = vadd.xlane.f32.xlu0 %v500
      %v502 = vpop.xlane.xlu0 %501
      %v503 = vsel %vm228, %v437, 0.0
      %504 = vadd.xlane.f32.xlu0 %v503
      %v505 = vpop.xlane.xlu0 %504
      %v506 = vsel %vm228, %v438, 0.0
      %507 = vadd.xlane.f32.xlu0 %v506
      %v508 = vpop.xlane.xlu0 %507
      %v509 = vsel %vm228, %v439, 0.0
      %510 = vadd.xlane.f32.xlu0 %v509
      %v511 = vpop.xlane.xlu0 %510
      %v512 = vsel %vm228, %v440, 0.0
      %513 = vadd.xlane.f32.xlu0 %v512
      %v514 = vpop.xlane.xlu0 %513
      %v515 = vsel %vm228, %v441, 0.0
      %516 = vadd.xlane.f32.xlu0 %v515
      %v517 = vpop.xlane.xlu0 %516
      %v518 = vsel %vm228, %v442, 0.0
      %519 = vadd.xlane.f32.xlu0 %v518
      %v520 = vpop.xlane.xlu0 %519
      %v521 = vsel %vm228, %v443, 0.0
      %522 = vadd.xlane.f32.xlu0 %v521
      %v523 = vpop.xlane.xlu0 %522
      %v524 = vsel %vm228, %v444, 0.0
      %525 = vadd.xlane.f32.xlu0 %v524
      %v526 = vpop.xlane.xlu0 %525
      %v527 = vsel %vm228, %v445, 0.0
      %528 = vadd.xlane.f32.xlu0 %v527
      %v529 = vpop.xlane.xlu0 %528
      %v530 = vsel %vm228, %v446, 0.0
      %531 = vadd.xlane.f32.xlu0 %v530
      %v532 = vpop.xlane.xlu0 %531
      %v533 = vsel %vm228, %v447, 0.0
      %534 = vadd.xlane.f32.xlu0 %v533
      %v535 = vpop.xlane.xlu0 %534
      %v536 = vsel %vm228, %v448, 0.0
      %537 = vadd.xlane.f32.xlu0 %v536
      %v538 = vpop.xlane.xlu0 %537
      %v539 = vsel %vm228, %v449, 0.0
      %540 = vadd.xlane.f32.xlu0 %v539
      %v541 = vpop.xlane.xlu0 %540
      %v542 = vsel %vm228, %v450, 0.0
      %543 = vadd.xlane.f32.xlu0 %v542
      %v544 = vpop.xlane.xlu0 %543
      %v545 = vsel %vm228, %v451, 0.0
      %546 = vadd.xlane.f32.xlu0 %v545
      %v547 = vpop.xlane.xlu0 %546
      %v548 = vsel %vm228, %v452, 0.0
      %549 = vadd.xlane.f32.xlu0 %v548
      %v550 = vpop.xlane.xlu0 %549
      %v551 = vsel %vm228, %v453, 0.0
      %552 = vadd.xlane.f32.xlu0 %v551
      %v553 = vpop.xlane.xlu0 %552
      %v554 = vsel %vm228, %v454, 0.0
      %555 = vadd.xlane.f32.xlu0 %v554
      %v556 = vpop.xlane.xlu0 %555
      %v557 = vsel %vm228, %v455, 0.0
      %558 = vadd.xlane.f32.xlu0 %v557
      %v559 = vpop.xlane.xlu0 %558
      %v560 = vsel %vm228, %v456, 0.0
      %561 = vadd.xlane.f32.xlu0 %v560
      %v562 = vpop.xlane.xlu0 %561
      %v563 = vsel %vm228, %v457, 0.0
      %564 = vadd.xlane.f32.xlu0 %v563
      %v565 = vpop.xlane.xlu0 %564
      %v566 = vsel %vm228, %v458, 0.0
      %567 = vadd.xlane.f32.xlu0 %v566
      %v568 = vpop.xlane.xlu0 %567
      %v569 = vsel %vm228, %v459, 0.0
      %570 = vadd.xlane.f32.xlu0 %v569
      %v571 = vpop.xlane.xlu0 %570
      %v572 = vsel %vm228, %v460, 0.0
      %573 = vadd.xlane.f32.xlu0 %v572
      %v574 = vpop.xlane.xlu0 %573
      %v575 = vsel %vm228, %v461, 0.0
      %576 = vadd.xlane.f32.xlu0 %v575
      %v577 = vpop.xlane.xlu0 %576
      %v578 = vsel %vm228, %v462, 0.0
      %579 = vadd.xlane.f32.xlu0 %v578
      %v580 = vpop.xlane.xlu0 %579
      %v581 = vsel %vm228, %v463, 0.0
      %582 = vadd.xlane.f32.xlu0 %v581
      %v583 = vpop.xlane.xlu0 %582
      %v584 = vsel %vm228, %v464, 0.0
      %585 = vadd.xlane.f32.xlu0 %v584
      %v586 = vpop.xlane.xlu0 %585
      %v587 = vsel %vm228, %v465, 0.0
      %588 = vadd.xlane.f32.xlu0 %v587
      %v589 = vpop.xlane.xlu0 %588
      %v590 = vsel %vm228, %v466, 0.0
      %591 = vadd.xlane.f32.xlu0 %v590
      %v592 = vpop.xlane.xlu0 %591
      %v593 = vsel %vm228, %v467, 0.0
      %594 = vadd.xlane.f32.xlu0 %v593
      %v595 = vpop.xlane.xlu0 %594
      %v596 = vsel %vm228, %v468, 0.0
      %597 = vadd.xlane.f32.xlu0 %v596
      %v598 = vpop.xlane.xlu0 %597
      %v599 = vsel %vm228, %v469, 0.0
      %600 = vadd.xlane.f32.xlu0 %v599
      %v601 = vpop.xlane.xlu0 %600
      %v602 = vsel %vm228, %v470, 0.0
      %603 = vadd.xlane.f32.xlu0 %v602
      %v604 = vpop.xlane.xlu0 %603
      %v605 = vsel %vm228, %v471, 0.0
      %606 = vadd.xlane.f32.xlu0 %v605
      %v607 = vpop.xlane.xlu0 %606
      %v608 = vsel %vm228, %v472, 0.0
      %609 = vadd.xlane.f32.xlu0 %v608
      %v610 = vpop.xlane.xlu0 %609
      %v611 = vsel %vm228, %v473, 0.0
      %612 = vadd.xlane.f32.xlu0 %v611
      %v613 = vpop.xlane.xlu0 %612
      %v614 = vsel %vm228, %v474, 0.0
      %615 = vadd.xlane.f32.xlu0 %v614
      %v616 = vpop.xlane.xlu0 %615
      %v617 = vsel %vm228, %v475, 0.0
      %618 = vadd.xlane.f32.xlu0 %v617
      %v619 = vpop.xlane.xlu0 %618
      %v620 = vsel %vm228, %v476, 0.0
      %621 = vadd.xlane.f32.xlu0 %v620
      %v622 = vpop.xlane.xlu0 %621
      %v623 = vsel %vm228, %v477, 0.0
      %624 = vadd.xlane.f32.xlu0 %v623
      %v625 = vpop.xlane.xlu0 %624
      %v626 = vsel %vm228, %v478, 0.0
      %627 = vadd.xlane.f32.xlu0 %v626
      %v628 = vpop.xlane.xlu0 %627
      %v629 = vmul.f32 %v481, 0.020408163
      %v630 = vmul.f32 %v484, 0.020408163
      %v631 = vmul.f32 %v487, 0.020408163
      %v632 = vmul.f32 %v490, 0.020408163
      %v633 = vmul.f32 %v493, 0.020408163
      %v634 = vmul.f32 %v496, 0.020408163
      %v635 = vmul.f32 %v499, 0.020408163
      %v636 = vmul.f32 %v502, 0.020408163
      %v637 = vmul.f32 %v505, 0.020408163
      %v638 = vmul.f32 %v508, 0.020408163
      %v639 = vmul.f32 %v511, 0.020408163
      %v640 = vmul.f32 %v514, 0.020408163
      %v641 = vmul.f32 %v517, 0.020408163
      %v642 = vmul.f32 %v520, 0.020408163
      %v643 = vmul.f32 %v523, 0.020408163
      %v644 = vmul.f32 %v526, 0.020408163
      %v645 = vmul.f32 %v529, 0.020408163
      %v646 = vmul.f32 %v532, 0.020408163
      %v647 = vmul.f32 %v535, 0.020408163
      %v648 = vmul.f32 %v538, 0.020408163
      %v649 = vmul.f32 %v541, 0.020408163
      %v650 = vmul.f32 %v544, 0.020408163
      %v651 = vmul.f32 %v547, 0.020408163
      %v652 = vmul.f32 %v550, 0.020408163
      %v653 = vmul.f32 %v553, 0.020408163
      %v654 = vmul.f32 %v556, 0.020408163
      %v655 = vmul.f32 %v559, 0.020408163
      %v656 = vmul.f32 %v562, 0.020408163
      %v657 = vmul.f32 %v565, 0.020408163
      %v658 = vmul.f32 %v568, 0.020408163
      %v659 = vmul.f32 %v571, 0.020408163
      %v660 = vmul.f32 %v574, 0.020408163
      %v661 = vmul.f32 %v577, 0.020408163
      %v662 = vmul.f32 %v580, 0.020408163
      %v663 = vmul.f32 %v583, 0.020408163
      %v664 = vmul.f32 %v586, 0.020408163
      %v665 = vmul.f32 %v589, 0.020408163
      %v666 = vmul.f32 %v592, 0.020408163
      %v667 = vmul.f32 %v595, 0.020408163
      %v668 = vmul.f32 %v598, 0.020408163
      %v669 = vmul.f32 %v601, 0.020408163
      %v670 = vmul.f32 %v604, 0.020408163
      %v671 = vmul.f32 %v607, 0.020408163
      %v672 = vmul.f32 %v610, 0.020408163
      %v673 = vmul.f32 %v613, 0.020408163
      %v674 = vmul.f32 %v616, 0.020408163
      %v675 = vmul.f32 %v619, 0.020408163
      %v676 = vmul.f32 %v622, 0.020408163
      %v677 = vmul.f32 %v625, 0.020408163
      %v678 = vmul.f32 %v628, 0.020408163
      %v679 = vmul.f32 %v379, %v379
      %v680 = vmul.f32 %v380, %v380
      %v681 = vmul.f32 %v381, %v381
      %v682 = vmul.f32 %v382, %v382
      %v683 = vmul.f32 %v383, %v383
      %v684 = vmul.f32 %v384, %v384
      %v685 = vmul.f32 %v385, %v385
      %v686 = vmul.f32 %v386, %v386
      %v687 = vmul.f32 %v387, %v387
      %v688 = vmul.f32 %v388, %v388
      %v689 = vmul.f32 %v389, %v389
      %v690 = vmul.f32 %v390, %v390
      %v691 = vmul.f32 %v391, %v391
      %v692 = vmul.f32 %v392, %v392
      %v693 = vmul.f32 %v393, %v393
      %v694 = vmul.f32 %v394, %v394
      %v695 = vmul.f32 %v395, %v395
      %v696 = vmul.f32 %v396, %v396
      %v697 = vmul.f32 %v397, %v397
      %v698 = vmul.f32 %v398, %v398
      %v699 = vmul.f32 %v399, %v399
      %v700 = vmul.f32 %v400, %v400
      %v701 = vmul.f32 %v401, %v401
      %v702 = vmul.f32 %v402, %v402
      %v703 = vmul.f32 %v403, %v403
      %v704 = vmul.f32 %v404, %v404
      %v705 = vmul.f32 %v405, %v405
      %v706 = vmul.f32 %v406, %v406
      %v707 = vmul.f32 %v407, %v407
      %v708 = vmul.f32 %v408, %v408
      %v709 = vmul.f32 %v409, %v409
      %v710 = vmul.f32 %v410, %v410
      %v711 = vmul.f32 %v411, %v411
      %v712 = vmul.f32 %v412, %v412
      %v713 = vmul.f32 %v413, %v413
      %v714 = vmul.f32 %v414, %v414
      %v715 = vmul.f32 %v415, %v415
      %v716 = vmul.f32 %v416, %v416
      %v717 = vmul.f32 %v417, %v417
      %v718 = vmul.f32 %v418, %v418
      %v719 = vmul.f32 %v419, %v419
      %v720 = vmul.f32 %v420, %v420
      %v721 = vmul.f32 %v421, %v421
      %v722 = vmul.f32 %v422, %v422
      %v723 = vmul.f32 %v423, %v423
      %v724 = vmul.f32 %v424, %v424
      %v725 = vmul.f32 %v425, %v425
      %v726 = vmul.f32 %v426, %v426
      %v727 = vmul.f32 %v427, %v427
      %v728 = vmul.f32 %v428, %v428
      %v729 = vsub.f32 %v629, %v679
      %v730 = vsub.f32 %v630, %v680
      %v731 = vsub.f32 %v631, %v681
      %v732 = vsub.f32 %v632, %v682
      %v733 = vsub.f32 %v633, %v683
      %v734 = vsub.f32 %v634, %v684
      %v735 = vsub.f32 %v635, %v685
      %v736 = vsub.f32 %v636, %v686
      %v737 = vsub.f32 %v637, %v687
      %v738 = vsub.f32 %v638, %v688
      %v739 = vsub.f32 %v639, %v689
      %v740 = vsub.f32 %v640, %v690
      %v741 = vsub.f32 %v641, %v691
      %v742 = vsub.f32 %v642, %v692
      %v743 = vsub.f32 %v643, %v693
      %v744 = vsub.f32 %v644, %v694
      %v745 = vsub.f32 %v645, %v695
      %v746 = vsub.f32 %v646, %v696
      %v747 = vsub.f32 %v647, %v697
      %v748 = vsub.f32 %v648, %v698
      %v749 = vsub.f32 %v649, %v699
      %v750 = vsub.f32 %v650, %v700
      %v751 = vsub.f32 %v651, %v701
      %v752 = vsub.f32 %v652, %v702
      %v753 = vsub.f32 %v653, %v703
      %v754 = vsub.f32 %v654, %v704
      %v755 = vsub.f32 %v655, %v705
      %v756 = vsub.f32 %v656, %v706
      %v757 = vsub.f32 %v657, %v707
      %v758 = vsub.f32 %v658, %v708
      %v759 = vsub.f32 %v659, %v709
      %v760 = vsub.f32 %v660, %v710
      %v761 = vsub.f32 %v661, %v711
      %v762 = vsub.f32 %v662, %v712
      %v763 = vsub.f32 %v663, %v713
      %v764 = vsub.f32 %v664, %v714
      %v765 = vsub.f32 %v665, %v715
      %v766 = vsub.f32 %v666, %v716
      %v767 = vsub.f32 %v667, %v717
      %v768 = vsub.f32 %v668, %v718
      %v769 = vsub.f32 %v669, %v719
      %v770 = vsub.f32 %v670, %v720
      %v771 = vsub.f32 %v671, %v721
      %v772 = vsub.f32 %v672, %v722
      %v773 = vsub.f32 %v673, %v723
      %v774 = vsub.f32 %v674, %v724
      %v775 = vsub.f32 %v675, %v725
      %v776 = vsub.f32 %v676, %v726
      %v777 = vsub.f32 %v677, %v727
      %v778 = vsub.f32 %v678, %v728
      %v779 = vmax.f32 %v729, 0.0
      %v780 = vmax.f32 %v730, 0.0
      %v781 = vmax.f32 %v731, 0.0
      %v782 = vmax.f32 %v732, 0.0
      %v783 = vmax.f32 %v733, 0.0
      %v784 = vmax.f32 %v734, 0.0
      %v785 = vmax.f32 %v735, 0.0
      %v786 = vmax.f32 %v736, 0.0
      %v787 = vmax.f32 %v737, 0.0
      %v788 = vmax.f32 %v738, 0.0
      %v789 = vmax.f32 %v739, 0.0
      %v790 = vmax.f32 %v740, 0.0
      %v791 = vmax.f32 %v741, 0.0
      %v792 = vmax.f32 %v742, 0.0
      %v793 = vmax.f32 %v743, 0.0
      %v794 = vmax.f32 %v744, 0.0
      %v795 = vmax.f32 %v745, 0.0
      %v796 = vmax.f32 %v746, 0.0
      %v797 = vmax.f32 %v747, 0.0
      %v798 = vmax.f32 %v748, 0.0
      %v799 = vmax.f32 %v749, 0.0
      %v800 = vmax.f32 %v750, 0.0
      %v801 = vmax.f32 %v751, 0.0
      %v802 = vmax.f32 %v752, 0.0
      %v803 = vmax.f32 %v753, 0.0
      %v804 = vmax.f32 %v754, 0.0
      %v805 = vmax.f32 %v755, 0.0
      %v806 = vmax.f32 %v756, 0.0
      %v807 = vmax.f32 %v757, 0.0
      %v808 = vmax.f32 %v758, 0.0
      %v809 = vmax.f32 %v759, 0.0
      %v810 = vmax.f32 %v760, 0.0
      %v811 = vmax.f32 %v761, 0.0
      %v812 = vmax.f32 %v762, 0.0
      %v813 = vmax.f32 %v763, 0.0
      %v814 = vmax.f32 %v764, 0.0
      %v815 = vmax.f32 %v765, 0.0
      %v816 = vmax.f32 %v766, 0.0
      %v817 = vmax.f32 %v767, 0.0
      %v818 = vmax.f32 %v768, 0.0
      %v819 = vmax.f32 %v769, 0.0
      %v820 = vmax.f32 %v770, 0.0
      %v821 = vmax.f32 %v771, 0.0
      %v822 = vmax.f32 %v772, 0.0
      %v823 = vmax.f32 %v773, 0.0
      %v824 = vmax.f32 %v774, 0.0
      %v825 = vmax.f32 %v775, 0.0
      %v826 = vmax.f32 %v776, 0.0
      %v827 = vmax.f32 %v777, 0.0
      %v828 = vmax.f32 %v778, 0.0
      %v829 = vld [vmem:[%s1] sm:$0xff]
      %v830 = vld [vmem:[%s1 + $0x8] sm:$0xff]
      %v831 = vld [vmem:[%s1 + $0x10] sm:$0xff]
      %v832 = vld [vmem:[%s1 + $0x18] sm:$0xff]
      %v833 = vld [vmem:[%s1 + $0x20] sm:$0xff]
      %v834 = vld [vmem:[%s1 + $0x28] sm:$0xff]
      %v835 = vld [vmem:[%s1 + $0x30] sm:$0xff]
      %v836 = vld [vmem:[%s1 + $0x38] sm:$0xff]
      %v837 = vld [vmem:[%s1 + $0x40] sm:$0xff]
      %v838 = vld [vmem:[%s1 + $0x48] sm:$0xff]
      %v839 = vld [vmem:[%s1 + $0x50] sm:$0xff]
      %v840 = vld [vmem:[%s1 + $0x58] sm:$0xff]
      %v841 = vld [vmem:[%s1 + $0x60] sm:$0xff]
      %v842 = vld [vmem:[%s1 + $0x68] sm:$0xff]
      %v843 = vld [vmem:[%s1 + $0x70] sm:$0xff]
      %v844 = vld [vmem:[%s1 + $0x78] sm:$0xff]
      %v845 = vld [vmem:[%s1 + $0x80] sm:$0xff]
      %v846 = vld [vmem:[%s1 + $0x88] sm:$0xff]
      %v847 = vld [vmem:[%s1 + $0x90] sm:$0xff]
      %v848 = vld [vmem:[%s1 + $0x98] sm:$0xff]
      %v849 = vld [vmem:[%s1 + $0xa0] sm:$0xff]
      %v850 = vld [vmem:[%s1 + $0xa8] sm:$0xff]
      %v851 = vld [vmem:[%s1 + $0xb0] sm:$0xff]
      %v852 = vld [vmem:[%s1 + $0xb8] sm:$0xff]
      %v853 = vld [vmem:[%s1 + $0xc0] sm:$0xff]
      %v854 = vld [vmem:[%s1 + $0xc8] sm:$0xff]
      %v855 = vld [vmem:[%s1 + $0xd0] sm:$0xff]
      %v856 = vld [vmem:[%s1 + $0xd8] sm:$0xff]
      %v857 = vld [vmem:[%s1 + $0xe0] sm:$0xff]
      %v858 = vld [vmem:[%s1 + $0xe8] sm:$0xff]
      %v859 = vld [vmem:[%s1 + $0xf0] sm:$0xff]
      %v860 = vld [vmem:[%s1 + $0xf8] sm:$0xff]
      %v861 = vld [vmem:[%s1 + $0x100] sm:$0xff]
      %v862 = vld [vmem:[%s1 + $0x108] sm:$0xff]
      %v863 = vld [vmem:[%s1 + $0x110] sm:$0xff]
      %v864 = vld [vmem:[%s1 + $0x118] sm:$0xff]
      %v865 = vld [vmem:[%s1 + $0x120] sm:$0xff]
      %v866 = vld [vmem:[%s1 + $0x128] sm:$0xff]
      %v867 = vld [vmem:[%s1 + $0x130] sm:$0xff]
      %v868 = vld [vmem:[%s1 + $0x138] sm:$0xff]
      %v869 = vld [vmem:[%s1 + $0x140] sm:$0xff]
      %v870 = vld [vmem:[%s1 + $0x148] sm:$0xff]
      %v871 = vld [vmem:[%s1 + $0x150] sm:$0xff]
      %v872 = vld [vmem:[%s1 + $0x158] sm:$0xff]
      %v873 = vld [vmem:[%s1 + $0x160] sm:$0xff]
      %v874 = vld [vmem:[%s1 + $0x168] sm:$0xff]
      %v875 = vld [vmem:[%s1 + $0x170] sm:$0xff]
      %v876 = vld [vmem:[%s1 + $0x178] sm:$0xff]
      %v877 = vld [vmem:[%s1 + $0x180] sm:$0xff]
      %v878 = vld [vmem:[%s1 + $0x188] sm:$0xff]
      %v879 = vadd.f32 %v779, 1e-05
      %v880 = vadd.f32 %v780, 1e-05
      %v881 = vadd.f32 %v781, 1e-05
      %v882 = vadd.f32 %v782, 1e-05
      %v883 = vadd.f32 %v783, 1e-05
      %v884 = vadd.f32 %v784, 1e-05
      %v885 = vadd.f32 %v785, 1e-05
      %v886 = vadd.f32 %v786, 1e-05
      %v887 = vadd.f32 %v787, 1e-05
      %v888 = vadd.f32 %v788, 1e-05
      %v889 = vadd.f32 %v789, 1e-05
      %v890 = vadd.f32 %v790, 1e-05
      %v891 = vadd.f32 %v791, 1e-05
      %v892 = vadd.f32 %v792, 1e-05
      %v893 = vadd.f32 %v793, 1e-05
      %v894 = vadd.f32 %v794, 1e-05
      %v895 = vadd.f32 %v795, 1e-05
      %v896 = vadd.f32 %v796, 1e-05
      %v897 = vadd.f32 %v797, 1e-05
      %v898 = vadd.f32 %v798, 1e-05
      %v899 = vadd.f32 %v799, 1e-05
      %v900 = vadd.f32 %v800, 1e-05
      %v901 = vadd.f32 %v801, 1e-05
      %v902 = vadd.f32 %v802, 1e-05
      %v903 = vadd.f32 %v803, 1e-05
      %v904 = vadd.f32 %v804, 1e-05
      %v905 = vadd.f32 %v805, 1e-05
      %v906 = vadd.f32 %v806, 1e-05
      %v907 = vadd.f32 %v807, 1e-05
      %v908 = vadd.f32 %v808, 1e-05
      %v909 = vadd.f32 %v809, 1e-05
      %v910 = vadd.f32 %v810, 1e-05
      %v911 = vadd.f32 %v811, 1e-05
      %v912 = vadd.f32 %v812, 1e-05
      %v913 = vadd.f32 %v813, 1e-05
      %v914 = vadd.f32 %v814, 1e-05
      %v915 = vadd.f32 %v815, 1e-05
      %v916 = vadd.f32 %v816, 1e-05
      %v917 = vadd.f32 %v817, 1e-05
      %v918 = vadd.f32 %v818, 1e-05
      %v919 = vadd.f32 %v819, 1e-05
      %v920 = vadd.f32 %v820, 1e-05
      %v921 = vadd.f32 %v821, 1e-05
      %v922 = vadd.f32 %v822, 1e-05
      %v923 = vadd.f32 %v823, 1e-05
      %v924 = vadd.f32 %v824, 1e-05
      %v925 = vadd.f32 %v825, 1e-05
      %v926 = vadd.f32 %v826, 1e-05
      %v927 = vadd.f32 %v827, 1e-05
      %v928 = vadd.f32 %v828, 1e-05
      %v929 = vrsqrt.pop %v879
      %v930 = vrsqrt.pop %v880
      %v931 = vrsqrt.pop %v881
      %v932 = vrsqrt.pop %v882
      %v933 = vrsqrt.pop %v883
      %v934 = vrsqrt.pop %v884
      %v935 = vrsqrt.pop %v885
      %v936 = vrsqrt.pop %v886
      %v937 = vrsqrt.pop %v887
      %v938 = vrsqrt.pop %v888
      %v939 = vrsqrt.pop %v889
      %v940 = vrsqrt.pop %v890
      %v941 = vrsqrt.pop %v891
      %v942 = vrsqrt.pop %v892
      %v943 = vrsqrt.pop %v893
      %v944 = vrsqrt.pop %v894
      %v945 = vrsqrt.pop %v895
      %v946 = vrsqrt.pop %v896
      %v947 = vrsqrt.pop %v897
      %v948 = vrsqrt.pop %v898
      %v949 = vrsqrt.pop %v899
      %v950 = vrsqrt.pop %v900
      %v951 = vrsqrt.pop %v901
      %v952 = vrsqrt.pop %v902
      %v953 = vrsqrt.pop %v903
      %v954 = vrsqrt.pop %v904
      %v955 = vrsqrt.pop %v905
      %v956 = vrsqrt.pop %v906
      %v957 = vrsqrt.pop %v907
      %v958 = vrsqrt.pop %v908
      %v959 = vrsqrt.pop %v909
      %v960 = vrsqrt.pop %v910
      %v961 = vrsqrt.pop %v911
      %v962 = vrsqrt.pop %v912
      %v963 = vrsqrt.pop %v913
      %v964 = vrsqrt.pop %v914
      %v965 = vrsqrt.pop %v915
      %v966 = vrsqrt.pop %v916
      %v967 = vrsqrt.pop %v917
      %v968 = vrsqrt.pop %v918
      %v969 = vrsqrt.pop %v919
      %v970 = vrsqrt.pop %v920
      %v971 = vrsqrt.pop %v921
      %v972 = vrsqrt.pop %v922
      %v973 = vrsqrt.pop %v923
      %v974 = vrsqrt.pop %v924
      %v975 = vrsqrt.pop %v925
      %v976 = vrsqrt.pop %v926
      %v977 = vrsqrt.pop %v927
      %v978 = vrsqrt.pop %v928
      %v979 = vmul.f32 %v829, %v929
      %v980 = vmul.f32 %v830, %v930
      %v981 = vmul.f32 %v831, %v931
      %v982 = vmul.f32 %v832, %v932
      %v983 = vmul.f32 %v833, %v933
      %v984 = vmul.f32 %v834, %v934
      %v985 = vmul.f32 %v835, %v935
      %v986 = vmul.f32 %v836, %v936
      %v987 = vmul.f32 %v837, %v937
      %v988 = vmul.f32 %v838, %v938
      %v989 = vmul.f32 %v839, %v939
      %v990 = vmul.f32 %v840, %v940
      %v991 = vmul.f32 %v841, %v941
      %v992 = vmul.f32 %v842, %v942
      %v993 = vmul.f32 %v843, %v943
      %v994 = vmul.f32 %v844, %v944
      %v995 = vmul.f32 %v845, %v945
      %v996 = vmul.f32 %v846, %v946
      %v997 = vmul.f32 %v847, %v947
      %v998 = vmul.f32 %v848, %v948
      %v999 = vmul.f32 %v849, %v949
      %v1000 = vmul.f32 %v850, %v950
      %v1001 = vmul.f32 %v851, %v951
      %v1002 = vmul.f32 %v852, %v952
      %v1003 = vmul.f32 %v853, %v953
      %v1004 = vmul.f32 %v854, %v954
      %v1005 = vmul.f32 %v855, %v955
      %v1006 = vmul.f32 %v856, %v956
      %v1007 = vmul.f32 %v857, %v957
      %v1008 = vmul.f32 %v858, %v958
      %v1009 = vmul.f32 %v859, %v959
      %v1010 = vmul.f32 %v860, %v960
      %v1011 = vmul.f32 %v861, %v961
      %v1012 = vmul.f32 %v862, %v962
      %v1013 = vmul.f32 %v863, %v963
      %v1014 = vmul.f32 %v864, %v964
      %v1015 = vmul.f32 %v865, %v965
      %v1016 = vmul.f32 %v866, %v966
      %v1017 = vmul.f32 %v867, %v967
      %v1018 = vmul.f32 %v868, %v968
      %v1019 = vmul.f32 %v869, %v969
      %v1020 = vmul.f32 %v870, %v970
      %v1021 = vmul.f32 %v871, %v971
      %v1022 = vmul.f32 %v872, %v972
      %v1023 = vmul.f32 %v873, %v973
      %v1024 = vmul.f32 %v874, %v974
      %v1025 = vmul.f32 %v875, %v975
      %v1026 = vmul.f32 %v876, %v976
      %v1027 = vmul.f32 %v877, %v977
      %v1028 = vmul.f32 %v878, %v978
      %v1029 = vmul.f32 %v379, %v979
      %v1030 = vmul.f32 %v380, %v980
      %v1031 = vmul.f32 %v381, %v981
      %v1032 = vmul.f32 %v382, %v982
      %v1033 = vmul.f32 %v383, %v983
      %v1034 = vmul.f32 %v384, %v984
      %v1035 = vmul.f32 %v385, %v985
      %v1036 = vmul.f32 %v386, %v986
      %v1037 = vmul.f32 %v387, %v987
      %v1038 = vmul.f32 %v388, %v988
      %v1039 = vmul.f32 %v389, %v989
      %v1040 = vmul.f32 %v390, %v990
      %v1041 = vmul.f32 %v391, %v991
      %v1042 = vmul.f32 %v392, %v992
      %v1043 = vmul.f32 %v393, %v993
      %v1044 = vmul.f32 %v394, %v994
      %v1045 = vmul.f32 %v395, %v995
      %v1046 = vmul.f32 %v396, %v996
      %v1047 = vmul.f32 %v397, %v997
      %v1048 = vmul.f32 %v398, %v998
      %v1049 = vmul.f32 %v399, %v999
      %v1050 = vmul.f32 %v400, %v1000
      %v1051 = vmul.f32 %v401, %v1001
      %v1052 = vmul.f32 %v402, %v1002
      %v1053 = vmul.f32 %v403, %v1003
      %v1054 = vmul.f32 %v404, %v1004
      %v1055 = vmul.f32 %v405, %v1005
      %v1056 = vmul.f32 %v406, %v1006
      %v1057 = vmul.f32 %v407, %v1007
      %v1058 = vmul.f32 %v408, %v1008
      %v1059 = vmul.f32 %v409, %v1009
      %v1060 = vmul.f32 %v410, %v1010
      %v1061 = vmul.f32 %v411, %v1011
      %v1062 = vmul.f32 %v412, %v1012
      %v1063 = vmul.f32 %v413, %v1013
      %v1064 = vmul.f32 %v414, %v1014
      %v1065 = vmul.f32 %v415, %v1015
      %v1066 = vmul.f32 %v416, %v1016
      %v1067 = vmul.f32 %v417, %v1017
      %v1068 = vmul.f32 %v418, %v1018
      %v1069 = vmul.f32 %v419, %v1019
      %v1070 = vmul.f32 %v420, %v1020
      %v1071 = vmul.f32 %v421, %v1021
      %v1072 = vmul.f32 %v422, %v1022
      %v1073 = vmul.f32 %v423, %v1023
      %v1074 = vmul.f32 %v424, %v1024
      %v1075 = vmul.f32 %v425, %v1025
      %v1076 = vmul.f32 %v426, %v1026
      %v1077 = vmul.f32 %v427, %v1027
      %v1078 = vmul.f32 %v428, %v1028
      %1129 = vrot.lane.b32.xlu0 %v1029, 1
      %v1130 = vpop.permute.xlu0 %1129
      %1131 = vrot.lane.b32.xlu0 %v1030, 1
      %v1132 = vpop.permute.xlu0 %1131
      %1133 = vrot.lane.b32.xlu0 %v1031, 1
      %v1134 = vpop.permute.xlu0 %1133
      %1135 = vrot.lane.b32.xlu0 %v1032, 1
      %v1136 = vpop.permute.xlu0 %1135
      %1137 = vrot.lane.b32.xlu0 %v1033, 1
      %v1138 = vpop.permute.xlu0 %1137
      %1139 = vrot.lane.b32.xlu0 %v1034, 1
      %v1140 = vpop.permute.xlu0 %1139
      %1141 = vrot.lane.b32.xlu0 %v1035, 1
      %v1142 = vpop.permute.xlu0 %1141
      %1143 = vrot.lane.b32.xlu0 %v1036, 1
      %v1144 = vpop.permute.xlu0 %1143
      %1145 = vrot.lane.b32.xlu0 %v1037, 1
      %v1146 = vpop.permute.xlu0 %1145
      %1147 = vrot.lane.b32.xlu0 %v1038, 1
      %v1148 = vpop.permute.xlu0 %1147
      %1149 = vrot.lane.b32.xlu0 %v1039, 1
      %v1150 = vpop.permute.xlu0 %1149
      %1151 = vrot.lane.b32.xlu0 %v1040, 1
      %v1152 = vpop.permute.xlu0 %1151
      %1153 = vrot.lane.b32.xlu0 %v1041, 1
      %v1154 = vpop.permute.xlu0 %1153
      %1155 = vrot.lane.b32.xlu0 %v1042, 1
      %v1156 = vpop.permute.xlu0 %1155
      %1157 = vrot.lane.b32.xlu0 %v1043, 1
      %v1158 = vpop.permute.xlu0 %1157
      %1159 = vrot.lane.b32.xlu0 %v1044, 1
      %v1160 = vpop.permute.xlu0 %1159
      %1161 = vrot.lane.b32.xlu0 %v1045, 1
      %v1162 = vpop.permute.xlu0 %1161
      %1163 = vrot.lane.b32.xlu0 %v1046, 1
      %v1164 = vpop.permute.xlu0 %1163
      %1165 = vrot.lane.b32.xlu0 %v1047, 1
      %v1166 = vpop.permute.xlu0 %1165
      %1167 = vrot.lane.b32.xlu0 %v1048, 1
      %v1168 = vpop.permute.xlu0 %1167
      %1169 = vrot.lane.b32.xlu0 %v1049, 1
      %v1170 = vpop.permute.xlu0 %1169
      %1171 = vrot.lane.b32.xlu0 %v1050, 1
      %v1172 = vpop.permute.xlu0 %1171
      %1173 = vrot.lane.b32.xlu0 %v1051, 1
      %v1174 = vpop.permute.xlu0 %1173
      %1175 = vrot.lane.b32.xlu0 %v1052, 1
      %v1176 = vpop.permute.xlu0 %1175
      %1177 = vrot.lane.b32.xlu0 %v1053, 1
      %v1178 = vpop.permute.xlu0 %1177
      %1179 = vrot.lane.b32.xlu0 %v1054, 1
      %v1180 = vpop.permute.xlu0 %1179
      %1181 = vrot.lane.b32.xlu0 %v1055, 1
      %v1182 = vpop.permute.xlu0 %1181
      %1183 = vrot.lane.b32.xlu0 %v1056, 1
      %v1184 = vpop.permute.xlu0 %1183
      %1185 = vrot.lane.b32.xlu0 %v1057, 1
      %v1186 = vpop.permute.xlu0 %1185
      %1187 = vrot.lane.b32.xlu0 %v1058, 1
      %v1188 = vpop.permute.xlu0 %1187
      %1189 = vrot.lane.b32.xlu0 %v1059, 1
      %v1190 = vpop.permute.xlu0 %1189
      %1191 = vrot.lane.b32.xlu0 %v1060, 1
      %v1192 = vpop.permute.xlu0 %1191
      %1193 = vrot.lane.b32.xlu0 %v1061, 1
      %v1194 = vpop.permute.xlu0 %1193
      %1195 = vrot.lane.b32.xlu0 %v1062, 1
      %v1196 = vpop.permute.xlu0 %1195
      %1197 = vrot.lane.b32.xlu0 %v1063, 1
      %v1198 = vpop.permute.xlu0 %1197
      %1199 = vrot.lane.b32.xlu0 %v1064, 1
      %v1200 = vpop.permute.xlu0 %1199
      %1201 = vrot.lane.b32.xlu0 %v1065, 1
      %v1202 = vpop.permute.xlu0 %1201
      %1203 = vrot.lane.b32.xlu0 %v1066, 1
      %v1204 = vpop.permute.xlu0 %1203
      %1205 = vrot.lane.b32.xlu0 %v1067, 1
      %v1206 = vpop.permute.xlu0 %1205
      %1207 = vrot.lane.b32.xlu0 %v1068, 1
      %v1208 = vpop.permute.xlu0 %1207
      %1209 = vrot.lane.b32.xlu0 %v1069, 1
      %v1210 = vpop.permute.xlu0 %1209
      %1211 = vrot.lane.b32.xlu0 %v1070, 1
      %v1212 = vpop.permute.xlu0 %1211
      %1213 = vrot.lane.b32.xlu0 %v1071, 1
      %v1214 = vpop.permute.xlu0 %1213
      %1215 = vrot.lane.b32.xlu0 %v1072, 1
      %v1216 = vpop.permute.xlu0 %1215
      %1217 = vrot.lane.b32.xlu0 %v1073, 1
      %v1218 = vpop.permute.xlu0 %1217
      %1219 = vrot.lane.b32.xlu0 %v1074, 1
      %v1220 = vpop.permute.xlu0 %1219
      %1221 = vrot.lane.b32.xlu0 %v1075, 1
      %v1222 = vpop.permute.xlu0 %1221
      %1223 = vrot.lane.b32.xlu0 %v1076, 1
      %v1224 = vpop.permute.xlu0 %1223
      %1225 = vrot.lane.b32.xlu0 %v1077, 1
      %v1226 = vpop.permute.xlu0 %1225
      %1227 = vrot.lane.b32.xlu0 %v1078, 1
      %v1228 = vpop.permute.xlu0 %1227
      %v1279 = vsub.f32 %v829, %v1130
      %v1280 = vsub.f32 %v830, %v1132
      %v1281 = vsub.f32 %v831, %v1134
      %v1282 = vsub.f32 %v832, %v1136
      %v1283 = vsub.f32 %v833, %v1138
      %v1284 = vsub.f32 %v834, %v1140
      %v1285 = vsub.f32 %v835, %v1142
      %v1286 = vsub.f32 %v836, %v1144
      %v1287 = vsub.f32 %v837, %v1146
      %v1288 = vsub.f32 %v838, %v1148
      %v1289 = vsub.f32 %v839, %v1150
      %v1290 = vsub.f32 %v840, %v1152
      %v1291 = vsub.f32 %v841, %v1154
      %v1292 = vsub.f32 %v842, %v1156
      %v1293 = vsub.f32 %v843, %v1158
      %v1294 = vsub.f32 %v844, %v1160
      %v1295 = vsub.f32 %v845, %v1162
      %v1296 = vsub.f32 %v846, %v1164
      %v1297 = vsub.f32 %v847, %v1166
      %v1298 = vsub.f32 %v848, %v1168
      %v1299 = vsub.f32 %v849, %v1170
      %v1300 = vsub.f32 %v850, %v1172
      %v1301 = vsub.f32 %v851, %v1174
      %v1302 = vsub.f32 %v852, %v1176
      %v1303 = vsub.f32 %v853, %v1178
      %v1304 = vsub.f32 %v854, %v1180
      %v1305 = vsub.f32 %v855, %v1182
      %v1306 = vsub.f32 %v856, %v1184
      %v1307 = vsub.f32 %v857, %v1186
      %v1308 = vsub.f32 %v858, %v1188
      %v1309 = vsub.f32 %v859, %v1190
      %v1310 = vsub.f32 %v860, %v1192
      %v1311 = vsub.f32 %v861, %v1194
      %v1312 = vsub.f32 %v862, %v1196
      %v1313 = vsub.f32 %v863, %v1198
      %v1314 = vsub.f32 %v864, %v1200
      %v1315 = vsub.f32 %v865, %v1202
      %v1316 = vsub.f32 %v866, %v1204
      %v1317 = vsub.f32 %v867, %v1206
      %v1318 = vsub.f32 %v868, %v1208
      %v1319 = vsub.f32 %v869, %v1210
      %v1320 = vsub.f32 %v870, %v1212
      %v1321 = vsub.f32 %v871, %v1214
      %v1322 = vsub.f32 %v872, %v1216
      %v1323 = vsub.f32 %v873, %v1218
      %v1324 = vsub.f32 %v874, %v1220
      %v1325 = vsub.f32 %v875, %v1222
      %v1326 = vsub.f32 %v876, %v1224
      %v1327 = vsub.f32 %v877, %v1226
      %v1328 = vsub.f32 %v878, %v1228
      %1330 = vset.pattern.permute.xlu0 0
      %1331 = vperm.xlu0 %1330, %v979
      %v1332 = vpop.permute.xlu0 %1331
      %1335 = vset.pattern.permute.xlu0 0
      %1336 = vperm.xlu0 %1335, %v980
      %v1337 = vpop.permute.xlu0 %1336
      %1340 = vset.pattern.permute.xlu0 0
      %1341 = vperm.xlu0 %1340, %v981
      %v1342 = vpop.permute.xlu0 %1341
      %1345 = vset.pattern.permute.xlu0 0
      %1346 = vperm.xlu0 %1345, %v982
      %v1347 = vpop.permute.xlu0 %1346
      %1350 = vset.pattern.permute.xlu0 0
      %1351 = vperm.xlu0 %1350, %v983
      %v1352 = vpop.permute.xlu0 %1351
      %1355 = vset.pattern.permute.xlu0 0
      %1356 = vperm.xlu0 %1355, %v984
      %v1357 = vpop.permute.xlu0 %1356
      %1360 = vset.pattern.permute.xlu0 0
      %1361 = vperm.xlu0 %1360, %v985
      %v1362 = vpop.permute.xlu0 %1361
      %1365 = vset.pattern.permute.xlu0 0
      %1366 = vperm.xlu0 %1365, %v986
      %v1367 = vpop.permute.xlu0 %1366
      %1370 = vset.pattern.permute.xlu0 0
      %1371 = vperm.xlu0 %1370, %v987
      %v1372 = vpop.permute.xlu0 %1371
      %1375 = vset.pattern.permute.xlu0 0
      %1376 = vperm.xlu0 %1375, %v988
      %v1377 = vpop.permute.xlu0 %1376
      %1380 = vset.pattern.permute.xlu0 0
      %1381 = vperm.xlu0 %1380, %v989
      %v1382 = vpop.permute.xlu0 %1381
      %1385 = vset.pattern.permute.xlu0 0
      %1386 = vperm.xlu0 %1385, %v990
      %v1387 = vpop.permute.xlu0 %1386
      %1390 = vset.pattern.permute.xlu0 0
      %1391 = vperm.xlu0 %1390, %v991
      %v1392 = vpop.permute.xlu0 %1391
      %1395 = vset.pattern.permute.xlu0 0
      %1396 = vperm.xlu0 %1395, %v992
      %v1397 = vpop.permute.xlu0 %1396
      %1400 = vset.pattern.permute.xlu0 0
      %1401 = vperm.xlu0 %1400, %v993
      %v1402 = vpop.permute.xlu0 %1401
      %1405 = vset.pattern.permute.xlu0 0
      %1406 = vperm.xlu0 %1405, %v994
      %v1407 = vpop.permute.xlu0 %1406
      %1410 = vset.pattern.permute.xlu0 0
      %1411 = vperm.xlu0 %1410, %v995
      %v1412 = vpop.permute.xlu0 %1411
      %1415 = vset.pattern.permute.xlu0 0
      %1416 = vperm.xlu0 %1415, %v996
      %v1417 = vpop.permute.xlu0 %1416
      %1420 = vset.pattern.permute.xlu0 0
      %1421 = vperm.xlu0 %1420, %v997
      %v1422 = vpop.permute.xlu0 %1421
      %1425 = vset.pattern.permute.xlu0 0
      %1426 = vperm.xlu0 %1425, %v998
      %v1427 = vpop.permute.xlu0 %1426
      %1430 = vset.pattern.permute.xlu0 0
      %1431 = vperm.xlu0 %1430, %v999
      %v1432 = vpop.permute.xlu0 %1431
      %1435 = vset.pattern.permute.xlu0 0
      %1436 = vperm.xlu0 %1435, %v1000
      %v1437 = vpop.permute.xlu0 %1436
      %1440 = vset.pattern.permute.xlu0 0
      %1441 = vperm.xlu0 %1440, %v1001
      %v1442 = vpop.permute.xlu0 %1441
      %1445 = vset.pattern.permute.xlu0 0
      %1446 = vperm.xlu0 %1445, %v1002
      %v1447 = vpop.permute.xlu0 %1446
      %1450 = vset.pattern.permute.xlu0 0
      %1451 = vperm.xlu0 %1450, %v1003
      %v1452 = vpop.permute.xlu0 %1451
      %1455 = vset.pattern.permute.xlu0 0
      %1456 = vperm.xlu0 %1455, %v1004
      %v1457 = vpop.permute.xlu0 %1456
      %1460 = vset.pattern.permute.xlu0 0
      %1461 = vperm.xlu0 %1460, %v1005
      %v1462 = vpop.permute.xlu0 %1461
      %1465 = vset.pattern.permute.xlu0 0
      %1466 = vperm.xlu0 %1465, %v1006
      %v1467 = vpop.permute.xlu0 %1466
      %1470 = vset.pattern.permute.xlu0 0
      %1471 = vperm.xlu0 %1470, %v1007
      %v1472 = vpop.permute.xlu0 %1471
      %1475 = vset.pattern.permute.xlu0 0
      %1476 = vperm.xlu0 %1475, %v1008
      %v1477 = vpop.permute.xlu0 %1476
      %1480 = vset.pattern.permute.xlu0 0
      %1481 = vperm.xlu0 %1480, %v1009
      %v1482 = vpop.permute.xlu0 %1481
      %1485 = vset.pattern.permute.xlu0 0
      %1486 = vperm.xlu0 %1485, %v1010
      %v1487 = vpop.permute.xlu0 %1486
      %1490 = vset.pattern.permute.xlu0 0
      %1491 = vperm.xlu0 %1490, %v1011
      %v1492 = vpop.permute.xlu0 %1491
      %1495 = vset.pattern.permute.xlu0 0
      %1496 = vperm.xlu0 %1495, %v1012
      %v1497 = vpop.permute.xlu0 %1496
      %1500 = vset.pattern.permute.xlu0 0
      %1501 = vperm.xlu0 %1500, %v1013
      %v1502 = vpop.permute.xlu0 %1501
      %1505 = vset.pattern.permute.xlu0 0
      %1506 = vperm.xlu0 %1505, %v1014
      %v1507 = vpop.permute.xlu0 %1506
      %1510 = vset.pattern.permute.xlu0 0
      %1511 = vperm.xlu0 %1510, %v1015
      %v1512 = vpop.permute.xlu0 %1511
      %1515 = vset.pattern.permute.xlu0 0
      %1516 = vperm.xlu0 %1515, %v1016
      %v1517 = vpop.permute.xlu0 %1516
      %1520 = vset.pattern.permute.xlu0 0
      %1521 = vperm.xlu0 %1520, %v1017
      %v1522 = vpop.permute.xlu0 %1521
      %1525 = vset.pattern.permute.xlu0 0
      %1526 = vperm.xlu0 %1525, %v1018
      %v1527 = vpop.permute.xlu0 %1526
      %1530 = vset.pattern.permute.xlu0 0
      %1531 = vperm.xlu0 %1530, %v1019
      %v1532 = vpop.permute.xlu0 %1531
      %1535 = vset.pattern.permute.xlu0 0
      %1536 = vperm.xlu0 %1535, %v1020
      %v1537 = vpop.permute.xlu0 %1536
      %1540 = vset.pattern.permute.xlu0 0
      %1541 = vperm.xlu0 %1540, %v1021
      %v1542 = vpop.permute.xlu0 %1541
      %1545 = vset.pattern.permute.xlu0 0
      %1546 = vperm.xlu0 %1545, %v1022
      %v1547 = vpop.permute.xlu0 %1546
      %1550 = vset.pattern.permute.xlu0 0
      %1551 = vperm.xlu0 %1550, %v1023
      %v1552 = vpop.permute.xlu0 %1551
      %1555 = vset.pattern.permute.xlu0 0
      %1556 = vperm.xlu0 %1555, %v1024
      %v1557 = vpop.permute.xlu0 %1556
      %1560 = vset.pattern.permute.xlu0 0
      %1561 = vperm.xlu0 %1560, %v1025
      %v1562 = vpop.permute.xlu0 %1561
      %1565 = vset.pattern.permute.xlu0 0
      %1566 = vperm.xlu0 %1565, %v1026
      %v1567 = vpop.permute.xlu0 %1566
      %1570 = vset.pattern.permute.xlu0 0
      %1571 = vperm.xlu0 %1570, %v1027
      %v1572 = vpop.permute.xlu0 %1571
      %1575 = vset.pattern.permute.xlu0 0
      %1576 = vperm.xlu0 %1575, %v1028
      %v1577 = vpop.permute.xlu0 %1576
      %v1579 = vmul.f32 %v178, %v1332
      %v1580 = vmul.f32 %v179, %v1337
      %v1581 = vmul.f32 %v180, %v1342
      %v1582 = vmul.f32 %v181, %v1347
      %v1583 = vmul.f32 %v182, %v1352
      %v1584 = vmul.f32 %v183, %v1357
      %v1585 = vmul.f32 %v184, %v1362
      %v1586 = vmul.f32 %v185, %v1367
      %v1587 = vmul.f32 %v186, %v1372
      %v1588 = vmul.f32 %v187, %v1377
      %v1589 = vmul.f32 %v188, %v1382
      %v1590 = vmul.f32 %v189, %v1387
      %v1591 = vmul.f32 %v190, %v1392
      %v1592 = vmul.f32 %v191, %v1397
      %v1593 = vmul.f32 %v192, %v1402
      %v1594 = vmul.f32 %v193, %v1407
      %v1595 = vmul.f32 %v194, %v1412
      %v1596 = vmul.f32 %v195, %v1417
      %v1597 = vmul.f32 %v196, %v1422
      %v1598 = vmul.f32 %v197, %v1427
      %v1599 = vmul.f32 %v198, %v1432
      %v1600 = vmul.f32 %v199, %v1437
      %v1601 = vmul.f32 %v200, %v1442
      %v1602 = vmul.f32 %v201, %v1447
      %v1603 = vmul.f32 %v202, %v1452
      %v1604 = vmul.f32 %v203, %v1457
      %v1605 = vmul.f32 %v204, %v1462
      %v1606 = vmul.f32 %v205, %v1467
      %v1607 = vmul.f32 %v206, %v1472
      %v1608 = vmul.f32 %v207, %v1477
      %v1609 = vmul.f32 %v208, %v1482
      %v1610 = vmul.f32 %v209, %v1487
      %v1611 = vmul.f32 %v210, %v1492
      %v1612 = vmul.f32 %v211, %v1497
      %v1613 = vmul.f32 %v212, %v1502
      %v1614 = vmul.f32 %v213, %v1507
      %v1615 = vmul.f32 %v214, %v1512
      %v1616 = vmul.f32 %v215, %v1517
      %v1617 = vmul.f32 %v216, %v1522
      %v1618 = vmul.f32 %v217, %v1527
      %v1619 = vmul.f32 %v218, %v1532
      %v1620 = vmul.f32 %v219, %v1537
      %v1621 = vmul.f32 %v220, %v1542
      %v1622 = vmul.f32 %v221, %v1547
      %v1623 = vmul.f32 %v222, %v1552
      %v1624 = vmul.f32 %v223, %v1557
      %v1625 = vmul.f32 %v224, %v1562
      %v1626 = vmul.f32 %v225, %v1567
      %v1627 = vmul.f32 %v226, %v1572
      %v1628 = vmul.f32 %v227, %v1577
      %1630 = vset.pattern.permute.xlu0 1
      %1631 = vperm.xlu0 %1630, %v1279
      %v1632 = vpop.permute.xlu0 %1631
      %1635 = vset.pattern.permute.xlu0 1
      %1636 = vperm.xlu0 %1635, %v1280
      %v1637 = vpop.permute.xlu0 %1636
      %1640 = vset.pattern.permute.xlu0 1
      %1641 = vperm.xlu0 %1640, %v1281
      %v1642 = vpop.permute.xlu0 %1641
      %1645 = vset.pattern.permute.xlu0 1
      %1646 = vperm.xlu0 %1645, %v1282
      %v1647 = vpop.permute.xlu0 %1646
      %1650 = vset.pattern.permute.xlu0 1
      %1651 = vperm.xlu0 %1650, %v1283
      %v1652 = vpop.permute.xlu0 %1651
      %1655 = vset.pattern.permute.xlu0 1
      %1656 = vperm.xlu0 %1655, %v1284
      %v1657 = vpop.permute.xlu0 %1656
      %1660 = vset.pattern.permute.xlu0 1
      %1661 = vperm.xlu0 %1660, %v1285
      %v1662 = vpop.permute.xlu0 %1661
      %1665 = vset.pattern.permute.xlu0 1
      %1666 = vperm.xlu0 %1665, %v1286
      %v1667 = vpop.permute.xlu0 %1666
      %1670 = vset.pattern.permute.xlu0 1
      %1671 = vperm.xlu0 %1670, %v1287
      %v1672 = vpop.permute.xlu0 %1671
      %1675 = vset.pattern.permute.xlu0 1
      %1676 = vperm.xlu0 %1675, %v1288
      %v1677 = vpop.permute.xlu0 %1676
      %1680 = vset.pattern.permute.xlu0 1
      %1681 = vperm.xlu0 %1680, %v1289
      %v1682 = vpop.permute.xlu0 %1681
      %1685 = vset.pattern.permute.xlu0 1
      %1686 = vperm.xlu0 %1685, %v1290
      %v1687 = vpop.permute.xlu0 %1686
      %1690 = vset.pattern.permute.xlu0 1
      %1691 = vperm.xlu0 %1690, %v1291
      %v1692 = vpop.permute.xlu0 %1691
      %1695 = vset.pattern.permute.xlu0 1
      %1696 = vperm.xlu0 %1695, %v1292
      %v1697 = vpop.permute.xlu0 %1696
      %1700 = vset.pattern.permute.xlu0 1
      %1701 = vperm.xlu0 %1700, %v1293
      %v1702 = vpop.permute.xlu0 %1701
      %1705 = vset.pattern.permute.xlu0 1
      %1706 = vperm.xlu0 %1705, %v1294
      %v1707 = vpop.permute.xlu0 %1706
      %1710 = vset.pattern.permute.xlu0 1
      %1711 = vperm.xlu0 %1710, %v1295
      %v1712 = vpop.permute.xlu0 %1711
      %1715 = vset.pattern.permute.xlu0 1
      %1716 = vperm.xlu0 %1715, %v1296
      %v1717 = vpop.permute.xlu0 %1716
      %1720 = vset.pattern.permute.xlu0 1
      %1721 = vperm.xlu0 %1720, %v1297
      %v1722 = vpop.permute.xlu0 %1721
      %1725 = vset.pattern.permute.xlu0 1
      %1726 = vperm.xlu0 %1725, %v1298
      %v1727 = vpop.permute.xlu0 %1726
      %1730 = vset.pattern.permute.xlu0 1
      %1731 = vperm.xlu0 %1730, %v1299
      %v1732 = vpop.permute.xlu0 %1731
      %1735 = vset.pattern.permute.xlu0 1
      %1736 = vperm.xlu0 %1735, %v1300
      %v1737 = vpop.permute.xlu0 %1736
      %1740 = vset.pattern.permute.xlu0 1
      %1741 = vperm.xlu0 %1740, %v1301
      %v1742 = vpop.permute.xlu0 %1741
      %1745 = vset.pattern.permute.xlu0 1
      %1746 = vperm.xlu0 %1745, %v1302
      %v1747 = vpop.permute.xlu0 %1746
      %1750 = vset.pattern.permute.xlu0 1
      %1751 = vperm.xlu0 %1750, %v1303
      %v1752 = vpop.permute.xlu0 %1751
      %1755 = vset.pattern.permute.xlu0 1
      %1756 = vperm.xlu0 %1755, %v1304
      %v1757 = vpop.permute.xlu0 %1756
      %1760 = vset.pattern.permute.xlu0 1
      %1761 = vperm.xlu0 %1760, %v1305
      %v1762 = vpop.permute.xlu0 %1761
      %1765 = vset.pattern.permute.xlu0 1
      %1766 = vperm.xlu0 %1765, %v1306
      %v1767 = vpop.permute.xlu0 %1766
      %1770 = vset.pattern.permute.xlu0 1
      %1771 = vperm.xlu0 %1770, %v1307
      %v1772 = vpop.permute.xlu0 %1771
      %1775 = vset.pattern.permute.xlu0 1
      %1776 = vperm.xlu0 %1775, %v1308
      %v1777 = vpop.permute.xlu0 %1776
      %1780 = vset.pattern.permute.xlu0 1
      %1781 = vperm.xlu0 %1780, %v1309
      %v1782 = vpop.permute.xlu0 %1781
      %1785 = vset.pattern.permute.xlu0 1
      %1786 = vperm.xlu0 %1785, %v1310
      %v1787 = vpop.permute.xlu0 %1786
      %1790 = vset.pattern.permute.xlu0 1
      %1791 = vperm.xlu0 %1790, %v1311
      %v1792 = vpop.permute.xlu0 %1791
      %1795 = vset.pattern.permute.xlu0 1
      %1796 = vperm.xlu0 %1795, %v1312
      %v1797 = vpop.permute.xlu0 %1796
      %1800 = vset.pattern.permute.xlu0 1
      %1801 = vperm.xlu0 %1800, %v1313
      %v1802 = vpop.permute.xlu0 %1801
      %1805 = vset.pattern.permute.xlu0 1
      %1806 = vperm.xlu0 %1805, %v1314
      %v1807 = vpop.permute.xlu0 %1806
      %1810 = vset.pattern.permute.xlu0 1
      %1811 = vperm.xlu0 %1810, %v1315
      %v1812 = vpop.permute.xlu0 %1811
      %1815 = vset.pattern.permute.xlu0 1
      %1816 = vperm.xlu0 %1815, %v1316
      %v1817 = vpop.permute.xlu0 %1816
      %1820 = vset.pattern.permute.xlu0 1
      %1821 = vperm.xlu0 %1820, %v1317
      %v1822 = vpop.permute.xlu0 %1821
      %1825 = vset.pattern.permute.xlu0 1
      %1826 = vperm.xlu0 %1825, %v1318
      %v1827 = vpop.permute.xlu0 %1826
      %1830 = vset.pattern.permute.xlu0 1
      %1831 = vperm.xlu0 %1830, %v1319
      %v1832 = vpop.permute.xlu0 %1831
      %1835 = vset.pattern.permute.xlu0 1
      %1836 = vperm.xlu0 %1835, %v1320
      %v1837 = vpop.permute.xlu0 %1836
      %1840 = vset.pattern.permute.xlu0 1
      %1841 = vperm.xlu0 %1840, %v1321
      %v1842 = vpop.permute.xlu0 %1841
      %1845 = vset.pattern.permute.xlu0 1
      %1846 = vperm.xlu0 %1845, %v1322
      %v1847 = vpop.permute.xlu0 %1846
      %1850 = vset.pattern.permute.xlu0 1
      %1851 = vperm.xlu0 %1850, %v1323
      %v1852 = vpop.permute.xlu0 %1851
      %1855 = vset.pattern.permute.xlu0 1
      %1856 = vperm.xlu0 %1855, %v1324
      %v1857 = vpop.permute.xlu0 %1856
      %1860 = vset.pattern.permute.xlu0 1
      %1861 = vperm.xlu0 %1860, %v1325
      %v1862 = vpop.permute.xlu0 %1861
      %1865 = vset.pattern.permute.xlu0 1
      %1866 = vperm.xlu0 %1865, %v1326
      %v1867 = vpop.permute.xlu0 %1866
      %1870 = vset.pattern.permute.xlu0 1
      %1871 = vperm.xlu0 %1870, %v1327
      %v1872 = vpop.permute.xlu0 %1871
      %1875 = vset.pattern.permute.xlu0 1
      %1876 = vperm.xlu0 %1875, %v1328
      %v1877 = vpop.permute.xlu0 %1876
      %v1879 = vadd.f32 %v1579, %v1632
      %v1880 = vadd.f32 %v1580, %v1637
      %v1881 = vadd.f32 %v1581, %v1642
      %v1882 = vadd.f32 %v1582, %v1647
      %v1883 = vadd.f32 %v1583, %v1652
      %v1884 = vadd.f32 %v1584, %v1657
      %v1885 = vadd.f32 %v1585, %v1662
      %v1886 = vadd.f32 %v1586, %v1667
      %v1887 = vadd.f32 %v1587, %v1672
      %v1888 = vadd.f32 %v1588, %v1677
      %v1889 = vadd.f32 %v1589, %v1682
      %v1890 = vadd.f32 %v1590, %v1687
      %v1891 = vadd.f32 %v1591, %v1692
      %v1892 = vadd.f32 %v1592, %v1697
      %v1893 = vadd.f32 %v1593, %v1702
      %v1894 = vadd.f32 %v1594, %v1707
      %v1895 = vadd.f32 %v1595, %v1712
      %v1896 = vadd.f32 %v1596, %v1717
      %v1897 = vadd.f32 %v1597, %v1722
      %v1898 = vadd.f32 %v1598, %v1727
      %v1899 = vadd.f32 %v1599, %v1732
      %v1900 = vadd.f32 %v1600, %v1737
      %v1901 = vadd.f32 %v1601, %v1742
      %v1902 = vadd.f32 %v1602, %v1747
      %v1903 = vadd.f32 %v1603, %v1752
      %v1904 = vadd.f32 %v1604, %v1757
      %v1905 = vadd.f32 %v1605, %v1762
      %v1906 = vadd.f32 %v1606, %v1767
      %v1907 = vadd.f32 %v1607, %v1772
      %v1908 = vadd.f32 %v1608, %v1777
      %v1909 = vadd.f32 %v1609, %v1782
      %v1910 = vadd.f32 %v1610, %v1787
      %v1911 = vadd.f32 %v1611, %v1792
      %v1912 = vadd.f32 %v1612, %v1797
      %v1913 = vadd.f32 %v1613, %v1802
      %v1914 = vadd.f32 %v1614, %v1807
      %v1915 = vadd.f32 %v1615, %v1812
      %v1916 = vadd.f32 %v1616, %v1817
      %v1917 = vadd.f32 %v1617, %v1822
      %v1918 = vadd.f32 %v1618, %v1827
      %v1919 = vadd.f32 %v1619, %v1832
      %v1920 = vadd.f32 %v1620, %v1837
      %v1921 = vadd.f32 %v1621, %v1842
      %v1922 = vadd.f32 %v1622, %v1847
      %v1923 = vadd.f32 %v1623, %v1852
      %v1924 = vadd.f32 %v1624, %v1857
      %v1925 = vadd.f32 %v1625, %v1862
      %v1926 = vadd.f32 %v1626, %v1867
      %v1927 = vadd.f32 %v1627, %v1872
      %v1928 = vadd.f32 %v1628, %v1877
      %v1929 = vmax.f32 %v1879, 0.0
      %v1930 = vmax.f32 %v1880, 0.0
      %v1931 = vmax.f32 %v1881, 0.0
      %v1932 = vmax.f32 %v1882, 0.0
      %v1933 = vmax.f32 %v1883, 0.0
      %v1934 = vmax.f32 %v1884, 0.0
      %v1935 = vmax.f32 %v1885, 0.0
      %v1936 = vmax.f32 %v1886, 0.0
      %v1937 = vmax.f32 %v1887, 0.0
      %v1938 = vmax.f32 %v1888, 0.0
      %v1939 = vmax.f32 %v1889, 0.0
      %v1940 = vmax.f32 %v1890, 0.0
      %v1941 = vmax.f32 %v1891, 0.0
      %v1942 = vmax.f32 %v1892, 0.0
      %v1943 = vmax.f32 %v1893, 0.0
      %v1944 = vmax.f32 %v1894, 0.0
      %v1945 = vmax.f32 %v1895, 0.0
      %v1946 = vmax.f32 %v1896, 0.0
      %v1947 = vmax.f32 %v1897, 0.0
      %v1948 = vmax.f32 %v1898, 0.0
      %v1949 = vmax.f32 %v1899, 0.0
      %v1950 = vmax.f32 %v1900, 0.0
      %v1951 = vmax.f32 %v1901, 0.0
      %v1952 = vmax.f32 %v1902, 0.0
      %v1953 = vmax.f32 %v1903, 0.0
      %v1954 = vmax.f32 %v1904, 0.0
      %v1955 = vmax.f32 %v1905, 0.0
      %v1956 = vmax.f32 %v1906, 0.0
      %v1957 = vmax.f32 %v1907, 0.0
      %v1958 = vmax.f32 %v1908, 0.0
      %v1959 = vmax.f32 %v1909, 0.0
      %v1960 = vmax.f32 %v1910, 0.0
      %v1961 = vmax.f32 %v1911, 0.0
      %v1962 = vmax.f32 %v1912, 0.0
      %v1963 = vmax.f32 %v1913, 0.0
      %v1964 = vmax.f32 %v1914, 0.0
      %v1965 = vmax.f32 %v1915, 0.0
      %v1966 = vmax.f32 %v1916, 0.0
      %v1967 = vmax.f32 %v1917, 0.0
      %v1968 = vmax.f32 %v1918, 0.0
      %v1969 = vmax.f32 %v1919, 0.0
      %v1970 = vmax.f32 %v1920, 0.0
      %v1971 = vmax.f32 %v1921, 0.0
      %v1972 = vmax.f32 %v1922, 0.0
      %v1973 = vmax.f32 %v1923, 0.0
      %v1974 = vmax.f32 %v1924, 0.0
      %v1975 = vmax.f32 %v1925, 0.0
      %v1976 = vmax.f32 %v1926, 0.0
      %v1977 = vmax.f32 %v1927, 0.0
      %v1978 = vmax.f32 %v1928, 0.0
      %v1979 = vpack.c.bf16 %v1930, %v1929
      %v1980 = vpack.c.bf16 %v1932, %v1931
      %v1981 = vpack.c.bf16 %v1934, %v1933
      %v1982 = vpack.c.bf16 %v1936, %v1935
      %v1983 = vpack.c.bf16 %v1938, %v1937
      %v1984 = vpack.c.bf16 %v1940, %v1939
      %v1985 = vpack.c.bf16 %v1942, %v1941
      %v1986 = vpack.c.bf16 %v1944, %v1943
      %v1987 = vpack.c.bf16 %v1946, %v1945
      %v1988 = vpack.c.bf16 %v1948, %v1947
      %v1989 = vpack.c.bf16 %v1950, %v1949
      %v1990 = vpack.c.bf16 %v1952, %v1951
      %v1991 = vpack.c.bf16 %v1954, %v1953
      %v1992 = vpack.c.bf16 %v1956, %v1955
      %v1993 = vpack.c.bf16 %v1958, %v1957
      %v1994 = vpack.c.bf16 %v1960, %v1959
      %v1995 = vpack.c.bf16 %v1962, %v1961
      %v1996 = vpack.c.bf16 %v1964, %v1963
      %v1997 = vpack.c.bf16 %v1966, %v1965
      %v1998 = vpack.c.bf16 %v1968, %v1967
      %v1999 = vpack.c.bf16 %v1970, %v1969
      %v2000 = vpack.c.bf16 %v1972, %v1971
      %v2001 = vpack.c.bf16 %v1974, %v1973
      %v2002 = vpack.c.bf16 %v1976, %v1975
      %v2003 = vpack.c.bf16 %v1978, %v1977
      %v2004 = vld [vmem:[%s169] sm:$0xff]
      %v2005 = vld [vmem:[%s169 + $0x8] sm:$0xff]
      %v2006 = vld [vmem:[%s169 + $0x10] sm:$0xff]
      %v2007 = vld [vmem:[%s169 + $0x18] sm:$0xff]
      %v2008 = vld [vmem:[%s169 + $0x20] sm:$0xff]
      %v2009 = vld [vmem:[%s169 + $0x28] sm:$0xff]
      %v2010 = vld [vmem:[%s169 + $0x30] sm:$0xff]
      %v2011 = vld [vmem:[%s169 + $0x38] sm:$0xff]
      %v2012 = vld [vmem:[%s169 + $0x40] sm:$0xff]
      %v2013 = vld [vmem:[%s169 + $0x48] sm:$0xff]
      %v2014 = vld [vmem:[%s169 + $0x50] sm:$0xff]
      %v2015 = vld [vmem:[%s169 + $0x58] sm:$0xff]
      %v2016 = vld [vmem:[%s169 + $0x60] sm:$0xff]
      %v2017 = vld [vmem:[%s169 + $0x68] sm:$0xff]
      %v2018 = vld [vmem:[%s169 + $0x70] sm:$0xff]
      %v2019 = vld [vmem:[%s169 + $0x78] sm:$0xff]
      %v2020 = vld [vmem:[%s169 + $0x80] sm:$0xff]
      %v2021 = vld [vmem:[%s169 + $0x88] sm:$0xff]
      %v2022 = vld [vmem:[%s169 + $0x90] sm:$0xff]
      %v2023 = vld [vmem:[%s169 + $0x98] sm:$0xff]
      %v2024 = vld [vmem:[%s169 + $0xa0] sm:$0xff]
      %v2025 = vld [vmem:[%s169 + $0xa8] sm:$0xff]
      %v2026 = vld [vmem:[%s169 + $0xb0] sm:$0xff]
      %v2027 = vld [vmem:[%s169 + $0xb8] sm:$0xff]
      %v2028 = vld [vmem:[%s169 + $0xc0] sm:$0xff]
      %v2029 = vld [vmem:[%s169 + $0xc8] sm:$0xff]
      %v2030 = vld [vmem:[%s169 + $0xd0] sm:$0xff]
      %v2031 = vld [vmem:[%s169 + $0xd8] sm:$0xff]
      %v2032 = vld [vmem:[%s169 + $0xe0] sm:$0xff]
      %v2033 = vld [vmem:[%s169 + $0xe8] sm:$0xff]
      %v2034 = vld [vmem:[%s169 + $0xf0] sm:$0xff]
      %v2035 = vld [vmem:[%s169 + $0xf8] sm:$0xff]
      %v2036 = vld [vmem:[%s169 + $0x100] sm:$0xff]
      %v2037 = vld [vmem:[%s169 + $0x108] sm:$0xff]
      %v2038 = vld [vmem:[%s169 + $0x110] sm:$0xff]
      %v2039 = vld [vmem:[%s169 + $0x118] sm:$0xff]
      %v2040 = vld [vmem:[%s169 + $0x120] sm:$0xff]
      %v2041 = vld [vmem:[%s169 + $0x128] sm:$0xff]
      %v2042 = vld [vmem:[%s169 + $0x130] sm:$0xff]
      %v2043 = vld [vmem:[%s169 + $0x138] sm:$0xff]
      %v2044 = vld [vmem:[%s169 + $0x140] sm:$0xff]
      %v2045 = vld [vmem:[%s169 + $0x148] sm:$0xff]
      %v2046 = vld [vmem:[%s169 + $0x150] sm:$0xff]
      %v2047 = vld [vmem:[%s169 + $0x158] sm:$0xff]
      %v2048 = vld [vmem:[%s169 + $0x160] sm:$0xff]
      %v2049 = vld [vmem:[%s169 + $0x168] sm:$0xff]
      %v2050 = vld [vmem:[%s169 + $0x170] sm:$0xff]
      %v2051 = vld [vmem:[%s169 + $0x178] sm:$0xff]
      %v2052 = vld [vmem:[%s169 + $0x180] sm:$0xff]
      %v2053 = vld [vmem:[%s169 + $0x188] sm:$0xff]
      %v2104 = vunpack.c.l.b16 %v2004
      %v2105 = vunpack.c.h.b16 %v2004
      %v2106 = vunpack.c.l.b16 %v2005
      %v2107 = vunpack.c.h.b16 %v2005
      %v2108 = vunpack.c.l.b16 %v2006
      %v2109 = vunpack.c.h.b16 %v2006
      %v2110 = vunpack.c.l.b16 %v2007
      %v2111 = vunpack.c.h.b16 %v2007
      %v2112 = vunpack.c.l.b16 %v2008
      %v2113 = vunpack.c.h.b16 %v2008
      %v2114 = vunpack.c.l.b16 %v2009
      %v2115 = vunpack.c.h.b16 %v2009
      %v2116 = vunpack.c.l.b16 %v2010
      %v2117 = vunpack.c.h.b16 %v2010
      %v2118 = vunpack.c.l.b16 %v2011
      %v2119 = vunpack.c.h.b16 %v2011
      %v2120 = vunpack.c.l.b16 %v2012
      %v2121 = vunpack.c.h.b16 %v2012
      %v2122 = vunpack.c.l.b16 %v2013
      %v2123 = vunpack.c.h.b16 %v2013
      %v2124 = vunpack.c.l.b16 %v2014
      %v2125 = vunpack.c.h.b16 %v2014
      %v2126 = vunpack.c.l.b16 %v2015
      %v2127 = vunpack.c.h.b16 %v2015
      %v2128 = vunpack.c.l.b16 %v2016
      %v2129 = vunpack.c.h.b16 %v2016
      %v2130 = vunpack.c.l.b16 %v2017
      %v2131 = vunpack.c.h.b16 %v2017
      %v2132 = vunpack.c.l.b16 %v2018
      %v2133 = vunpack.c.h.b16 %v2018
      %v2134 = vunpack.c.l.b16 %v2019
      %v2135 = vunpack.c.h.b16 %v2019
      %v2136 = vunpack.c.l.b16 %v2020
      %v2137 = vunpack.c.h.b16 %v2020
      %v2138 = vunpack.c.l.b16 %v2021
      %v2139 = vunpack.c.h.b16 %v2021
      %v2140 = vunpack.c.l.b16 %v2022
      %v2141 = vunpack.c.h.b16 %v2022
      %v2142 = vunpack.c.l.b16 %v2023
      %v2143 = vunpack.c.h.b16 %v2023
      %v2144 = vunpack.c.l.b16 %v2024
      %v2145 = vunpack.c.h.b16 %v2024
      %v2146 = vunpack.c.l.b16 %v2025
      %v2147 = vunpack.c.h.b16 %v2025
      %v2148 = vunpack.c.l.b16 %v2026
      %v2149 = vunpack.c.h.b16 %v2026
      %v2150 = vunpack.c.l.b16 %v2027
      %v2151 = vunpack.c.h.b16 %v2027
      %v2152 = vunpack.c.l.b16 %v2028
      %v2153 = vunpack.c.h.b16 %v2028
      %v2154 = vunpack.c.l.b16 %v2029
      %v2155 = vunpack.c.h.b16 %v2029
      %v2156 = vunpack.c.l.b16 %v2030
      %v2157 = vunpack.c.h.b16 %v2030
      %v2158 = vunpack.c.l.b16 %v2031
      %v2159 = vunpack.c.h.b16 %v2031
      %v2160 = vunpack.c.l.b16 %v2032
      %v2161 = vunpack.c.h.b16 %v2032
      %v2162 = vunpack.c.l.b16 %v2033
      %v2163 = vunpack.c.h.b16 %v2033
      %v2164 = vunpack.c.l.b16 %v2034
      %v2165 = vunpack.c.h.b16 %v2034
      %v2166 = vunpack.c.l.b16 %v2035
      %v2167 = vunpack.c.h.b16 %v2035
      %v2168 = vunpack.c.l.b16 %v2036
      %v2169 = vunpack.c.h.b16 %v2036
      %v2170 = vunpack.c.l.b16 %v2037
      %v2171 = vunpack.c.h.b16 %v2037
      %v2172 = vunpack.c.l.b16 %v2038
      %v2173 = vunpack.c.h.b16 %v2038
      %v2174 = vunpack.c.l.b16 %v2039
      %v2175 = vunpack.c.h.b16 %v2039
      %v2176 = vunpack.c.l.b16 %v2040
      %v2177 = vunpack.c.h.b16 %v2040
      %v2178 = vunpack.c.l.b16 %v2041
      %v2179 = vunpack.c.h.b16 %v2041
      %v2180 = vunpack.c.l.b16 %v2042
      %v2181 = vunpack.c.h.b16 %v2042
      %v2182 = vunpack.c.l.b16 %v2043
      %v2183 = vunpack.c.h.b16 %v2043
      %v2184 = vunpack.c.l.b16 %v2044
      %v2185 = vunpack.c.h.b16 %v2044
      %v2186 = vunpack.c.l.b16 %v2045
      %v2187 = vunpack.c.h.b16 %v2045
      %v2188 = vunpack.c.l.b16 %v2046
      %v2189 = vunpack.c.h.b16 %v2046
      %v2190 = vunpack.c.l.b16 %v2047
      %v2191 = vunpack.c.h.b16 %v2047
      %v2192 = vunpack.c.l.b16 %v2048
      %v2193 = vunpack.c.h.b16 %v2048
      %v2194 = vunpack.c.l.b16 %v2049
      %v2195 = vunpack.c.h.b16 %v2049
      %v2196 = vunpack.c.l.b16 %v2050
      %v2197 = vunpack.c.h.b16 %v2050
      %v2198 = vunpack.c.l.b16 %v2051
      %v2199 = vunpack.c.h.b16 %v2051
      %v2200 = vunpack.c.l.b16 %v2052
      %v2201 = vunpack.c.h.b16 %v2052
      %v2202 = vunpack.c.l.b16 %v2053
      %v2203 = vunpack.c.h.b16 %v2053
      %v2204 = vpack.c.b16 %v2108, %v2104
      %v2205 = vpack.c.b16 %v2109, %v2105
      %v2206 = vpack.c.b16 %v2110, %v2106
      %v2207 = vpack.c.b16 %v2111, %v2107
      %v2208 = vpack.c.b16 %v2116, %v2112
      %v2209 = vpack.c.b16 %v2117, %v2113
      %v2210 = vpack.c.b16 %v2118, %v2114
      %v2211 = vpack.c.b16 %v2119, %v2115
      %v2212 = vpack.c.b16 %v2124, %v2120
      %v2213 = vpack.c.b16 %v2125, %v2121
      %v2214 = vpack.c.b16 %v2126, %v2122
      %v2215 = vpack.c.b16 %v2127, %v2123
      %v2216 = vpack.c.b16 %v2132, %v2128
      %v2217 = vpack.c.b16 %v2133, %v2129
      %v2218 = vpack.c.b16 %v2134, %v2130
      %v2219 = vpack.c.b16 %v2135, %v2131
      %v2220 = vpack.c.b16 %v2140, %v2136
      %v2221 = vpack.c.b16 %v2141, %v2137
      %v2222 = vpack.c.b16 %v2142, %v2138
      %v2223 = vpack.c.b16 %v2143, %v2139
      %v2224 = vpack.c.b16 %v2148, %v2144
      %v2225 = vpack.c.b16 %v2149, %v2145
      %v2226 = vpack.c.b16 %v2150, %v2146
      %v2227 = vpack.c.b16 %v2151, %v2147
      %v2228 = vpack.c.b16 %v2156, %v2152
      %v2229 = vpack.c.b16 %v2157, %v2153
      %v2230 = vpack.c.b16 %v2158, %v2154
      %v2231 = vpack.c.b16 %v2159, %v2155
      %v2232 = vpack.c.b16 %v2164, %v2160
      %v2233 = vpack.c.b16 %v2165, %v2161
      %v2234 = vpack.c.b16 %v2166, %v2162
      %v2235 = vpack.c.b16 %v2167, %v2163
      %v2236 = vpack.c.b16 %v2172, %v2168
      %v2237 = vpack.c.b16 %v2173, %v2169
      %v2238 = vpack.c.b16 %v2174, %v2170
      %v2239 = vpack.c.b16 %v2175, %v2171
      %v2240 = vpack.c.b16 %v2180, %v2176
      %v2241 = vpack.c.b16 %v2181, %v2177
      %v2242 = vpack.c.b16 %v2182, %v2178
      %v2243 = vpack.c.b16 %v2183, %v2179
      %v2244 = vpack.c.b16 %v2188, %v2184
      %v2245 = vpack.c.b16 %v2189, %v2185
      %v2246 = vpack.c.b16 %v2190, %v2186
      %v2247 = vpack.c.b16 %v2191, %v2187
      %v2248 = vpack.c.b16 %v2196, %v2192
      %v2249 = vpack.c.b16 %v2197, %v2193
      %v2250 = vpack.c.b16 %v2198, %v2194
      %v2251 = vpack.c.b16 %v2199, %v2195
      %v2252 = vpack.c.b16 %v2200, %v2200
      %v2253 = vpack.c.b16 %v2201, %v2201
      %v2254 = vpack.c.b16 %v2202, %v2202
      %v2255 = vpack.c.b16 %v2203, %v2203
      %vm2295 = vcmask 130048
      %v2297 = vsel %vm2295, %v2207, 0
      %v2300 = vsel %vm2295, %v2211, 0
      %v2303 = vsel %vm2295, %v2215, 0
      %v2306 = vsel %vm2295, %v2219, 0
      %v2309 = vsel %vm2295, %v2223, 0
      %v2312 = vsel %vm2295, %v2227, 0
      %v2315 = vsel %vm2295, %v2231, 0
      %v2318 = vsel %vm2295, %v2235, 0
      %v2321 = vsel %vm2295, %v2239, 0
      %v2324 = vsel %vm2295, %v2243, 0
      %v2327 = vsel %vm2295, %v2247, 0
      %v2330 = vsel %vm2295, %v2251, 0
      %v2333 = vsel %vm2295, %v2255, 0
      %2335 = vmatprep.subr.bf16.mxu0 0
      %2336 = vmatpush1.bf16.msra.mxu0 %v1979
      %2337 = vmatprep.subr.bf16.mxu0 0
      %2338 = vmatpush1.bf16.msra.mxu0 %v1980
      %2339 = vmatprep.subr.bf16.mxu0 0
      %2340 = vmatpush1.bf16.msra.mxu0 %v1981
      %2341 = vmatprep.subr.bf16.mxu0 0
      %2342 = vmatpush1.bf16.msra.mxu0 %v1982
      %2343 = vmatprep.subr.bf16.mxu0 0
      %2344 = vmatpush1.bf16.msra.mxu0 %v1983
      %2345 = vmatprep.subr.bf16.mxu0 0
      %2346 = vmatpush1.bf16.msra.mxu0 %v1984
      %2347 = vmatprep.subr.bf16.mxu0 0
      %2348 = vmatpush1.bf16.msra.mxu0 %v1985
      %2349 = vmatprep.subr.bf16.mxu0 0
      %2350 = vmatpush1.bf16.msra.mxu0 %v1986
      %2351 = vmatprep.subr.bf16.mxu0 0
      %2352 = vmatpush1.bf16.msra.mxu0 %v1987
      %2353 = vmatprep.subr.bf16.mxu0 0
      %2354 = vmatpush1.bf16.msra.mxu0 %v1988
      %2355 = vmatprep.subr.bf16.mxu0 0
      %2356 = vmatpush1.bf16.msra.mxu0 %v1989
      %2357 = vmatprep.subr.bf16.mxu0 0
      %2358 = vmatpush1.bf16.msra.mxu0 %v1990
      %2359 = vmatprep.subr.bf16.mxu0 0
      %2360 = vmatpush1.bf16.msra.mxu0 %v1991
      %2361 = vmatprep.subr.bf16.mxu0 0
      %2362 = vmatpush1.bf16.msra.mxu0 %v1992
      %2363 = vmatprep.subr.bf16.mxu0 0
      %2364 = vmatpush1.bf16.msra.mxu0 %v1993
      %2365 = vmatprep.subr.bf16.mxu0 0
      %2366 = vmatpush1.bf16.msra.mxu0 %v1994
      %2367 = vmatprep.mubr.bf16.mxu0 %v2205
      %2368 = vmatmul.mubr.bf16.gmra.mrb[0].mxu0 %v2204
      %v2369 = vpop.f32.mrb[0].mxu0
      %v2370 = vadd.f32 0.0, %v2369
      %v2371 = vpop.f32.mrb[0].mxu0
      %v2372 = vpop.f32.mrb[0].mxu0
      %v2373 = vadd.f32 0.0, %v2372
      %v2374 = vpop.f32.mrb[0].mxu0
      %2375 = vmatprep.mubr.bf16.mxu0 %v2209
      %2376 = vmatmul.mubr.bf16.gmra.mrb[0].mxu0 %v2208
      %v2377 = vpop.f32.mrb[0].mxu0
      %v2378 = vadd.f32 0.0, %v2377
      %v2379 = vpop.f32.mrb[0].mxu0
      %v2380 = vpop.f32.mrb[0].mxu0
      %v2381 = vadd.f32 0.0, %v2380
      %v2382 = vpop.f32.mrb[0].mxu0
      %2383 = vmatprep.mubr.bf16.mxu0 %v2213
      %2384 = vmatmul.mubr.bf16.gmra.mrb[0].mxu0 %v2212
      %v2385 = vpop.f32.mrb[0].mxu0
      %v2386 = vadd.f32 0.0, %v2385
      %v2387 = vpop.f32.mrb[0].mxu0
      %v2388 = vpop.f32.mrb[0].mxu0
      %v2389 = vadd.f32 0.0, %v2388
      %v2390 = vpop.f32.mrb[0].mxu0
      %2391 = vmatprep.mubr.bf16.mxu0 %v2217
      %2392 = vmatmul.mubr.bf16.gmra.mrb[0].mxu0 %v2216
      %v2393 = vpop.f32.mrb[0].mxu0
      %v2394 = vadd.f32 0.0, %v2393
      %v2395 = vpop.f32.mrb[0].mxu0
      %v2396 = vpop.f32.mrb[0].mxu0
      %v2397 = vadd.f32 0.0, %v2396
      %v2398 = vpop.f32.mrb[0].mxu0
      %2399 = vmatprep.mubr.bf16.mxu0 %v2221
      %2400 = vmatmul.mubr.bf16.gmra.mrb[0].mxu0 %v2220
      %v2401 = vpop.f32.mrb[0].mxu0
      %v2402 = vadd.f32 0.0, %v2401
      %v2403 = vpop.f32.mrb[0].mxu0
      %v2404 = vpop.f32.mrb[0].mxu0
      %v2405 = vadd.f32 0.0, %v2404
      %v2406 = vpop.f32.mrb[0].mxu0
      %2407 = vmatprep.mubr.bf16.mxu0 %v2225
      %2408 = vmatmul.mubr.bf16.gmra.mrb[0].mxu0 %v2224
      %v2409 = vpop.f32.mrb[0].mxu0
      %v2410 = vadd.f32 0.0, %v2409
      %v2411 = vpop.f32.mrb[0].mxu0
      %v2412 = vpop.f32.mrb[0].mxu0
      %v2413 = vadd.f32 0.0, %v2412
      %v2414 = vpop.f32.mrb[0].mxu0
      %2415 = vmatprep.mubr.bf16.mxu0 %v2229
      %2416 = vmatmul.mubr.bf16.gmra.mrb[0].mxu0 %v2228
      %v2417 = vpop.f32.mrb[0].mxu0
      %v2418 = vadd.f32 0.0, %v2417
      %v2419 = vpop.f32.mrb[0].mxu0
      %v2420 = vpop.f32.mrb[0].mxu0
      %v2421 = vadd.f32 0.0, %v2420
      %v2422 = vpop.f32.mrb[0].mxu0
      %2423 = vmatprep.mubr.bf16.mxu0 %v2233
      %2424 = vmatmul.mubr.bf16.gmra.mrb[0].mxu0 %v2232
      %v2425 = vpop.f32.mrb[0].mxu0
      %v2426 = vadd.f32 0.0, %v2425
      %v2427 = vpop.f32.mrb[0].mxu0
      %v2428 = vpop.f32.mrb[0].mxu0
      %v2429 = vadd.f32 0.0, %v2428
      %v2430 = vpop.f32.mrb[0].mxu0
      %2431 = vmatprep.mubr.bf16.mxu0 %v2237
      %2432 = vmatmul.mubr.bf16.gmra.mrb[0].mxu0 %v2236
      %v2433 = vpop.f32.mrb[0].mxu0
      %v2434 = vadd.f32 0.0, %v2433
      %v2435 = vpop.f32.mrb[0].mxu0
      %v2436 = vpop.f32.mrb[0].mxu0
      %v2437 = vadd.f32 0.0, %v2436
      %v2438 = vpop.f32.mrb[0].mxu0
      %2439 = vmatprep.mubr.bf16.mxu0 %v2241
      %2440 = vmatmul.mubr.bf16.gmra.mrb[0].mxu0 %v2240
      %v2441 = vpop.f32.mrb[0].mxu0
      %v2442 = vadd.f32 0.0, %v2441
      %v2443 = vpop.f32.mrb[0].mxu0
      %v2444 = vpop.f32.mrb[0].mxu0
      %v2445 = vadd.f32 0.0, %v2444
      %v2446 = vpop.f32.mrb[0].mxu0
      %2447 = vmatprep.mubr.bf16.mxu0 %v2245
      %2448 = vmatmul.mubr.bf16.gmra.mrb[0].mxu0 %v2244
      %v2449 = vpop.f32.mrb[0].mxu0
      %v2450 = vadd.f32 0.0, %v2449
      %v2451 = vpop.f32.mrb[0].mxu0
      %v2452 = vpop.f32.mrb[0].mxu0
      %v2453 = vadd.f32 0.0, %v2452
      %v2454 = vpop.f32.mrb[0].mxu0
      %2455 = vmatprep.mubr.bf16.mxu0 %v2249
      %2456 = vmatmul.mubr.bf16.gmra.mrb[0].mxu0 %v2248
      %v2457 = vpop.f32.mrb[0].mxu0
      %v2458 = vadd.f32 0.0, %v2457
      %v2459 = vpop.f32.mrb[0].mxu0
      %v2460 = vpop.f32.mrb[0].mxu0
      %v2461 = vadd.f32 0.0, %v2460
      %v2462 = vpop.f32.mrb[0].mxu0
      %2463 = vmatprep.mubr.bf16.mxu0 %v2253
      %2464 = vmatmul.mubr.bf16.gmra.mrb[0].mxu0 %v2252
      %v2465 = vpop.f32.mrb[0].mxu0
      %v2466 = vadd.f32 0.0, %v2465
      %v2467 = vpop.f32.mrb[0].mxu0
      %v2468 = vpop.f32.mrb[0].mxu0
      %v2469 = vpop.f32.mrb[0].mxu0
      %2470 = vdwg.mxu0
      %2471 = vmatprep.subr.bf16.mxu0 0
      %2472 = vmatpush1.bf16.msra.mxu0 %v1995
      %2473 = vmatprep.subr.bf16.mxu0 0
      %2474 = vmatpush1.bf16.msra.mxu0 %v1996
      %2475 = vmatprep.subr.bf16.mxu0 0
      %2476 = vmatpush1.bf16.msra.mxu0 %v1997
      %2477 = vmatprep.subr.bf16.mxu0 0
      %2478 = vmatpush1.bf16.msra.mxu0 %v1998
      %2479 = vmatprep.subr.bf16.mxu0 0
      %2480 = vmatpush1.bf16.msra.mxu0 %v1999
      %2481 = vmatprep.subr.bf16.mxu0 0
      %2482 = vmatpush1.bf16.msra.mxu0 %v2000
      %2483 = vmatprep.subr.bf16.mxu0 0
      %2484 = vmatpush1.bf16.msra.mxu0 %v2001
      %2485 = vmatprep.subr.bf16.mxu0 0
      %2486 = vmatpush1.bf16.msra.mxu0 %v2002
      %2487 = vmatprep.subr.bf16.mxu0 0
      %2488 = vmatpush1.bf16.msra.mxu0 %v2003
      %2489 = vmatprep.subr.bf16.mxu0 0
      %2490 = vmatpush1.bf16.msra.mxu0 0
      %2491 = vmatprep.subr.bf16.mxu0 0
      %2492 = vmatpush1.bf16.msra.mxu0 0
      %2493 = vmatprep.subr.bf16.mxu0 0
      %2494 = vmatpush1.bf16.msra.mxu0 0
      %2495 = vmatprep.subr.bf16.mxu0 0
      %2496 = vmatpush1.bf16.msra.mxu0 0
      %2497 = vmatprep.subr.bf16.mxu0 0
      %2498 = vmatpush1.bf16.msra.mxu0 0
      %2499 = vmatprep.subr.bf16.mxu0 0
      %2500 = vmatpush1.bf16.msra.mxu0 0
      %2501 = vmatprep.subr.bf16.mxu0 0
      %2502 = vmatpush1.bf16.msra.mxu0 0
      %2503 = vmatprep.mubr.bf16.mxu0 %v2297
      %2504 = vmatmul.mubr.bf16.gmra.mrb[0].mxu0 %v2206
      %v2505 = vpop.f32.mrb[0].mxu0
      %v2506 = vadd.f32 %v2370, %v2505
      %v2507 = vpop.f32.mrb[0].mxu0
      %v2508 = vpop.f32.mrb[0].mxu0
      %v2509 = vadd.f32 %v2373, %v2508
      %v2510 = vpop.f32.mrb[0].mxu0
      %2511 = vmatprep.mubr.bf16.mxu0 %v2300
      %2512 = vmatmul.mubr.bf16.gmra.mrb[0].mxu0 %v2210
      %v2513 = vpop.f32.mrb[0].mxu0
      %v2514 = vadd.f32 %v2378, %v2513
      %v2515 = vpop.f32.mrb[0].mxu0
      %v2516 = vpop.f32.mrb[0].mxu0
      %v2517 = vadd.f32 %v2381, %v2516
      %v2518 = vpop.f32.mrb[0].mxu0
      %2519 = vmatprep.mubr.bf16.mxu0 %v2303
      %2520 = vmatmul.mubr.bf16.gmra.mrb[0].mxu0 %v2214
      %v2521 = vpop.f32.mrb[0].mxu0
      %v2522 = vadd.f32 %v2386, %v2521
      %v2523 = vpop.f32.mrb[0].mxu0
      %v2524 = vpop.f32.mrb[0].mxu0
      %v2525 = vadd.f32 %v2389, %v2524
      %v2526 = vpop.f32.mrb[0].mxu0
      %2527 = vmatprep.mubr.bf16.mxu0 %v2306
      %2528 = vmatmul.mubr.bf16.gmra.mrb[0].mxu0 %v2218
      %v2529 = vpop.f32.mrb[0].mxu0
      %v2530 = vadd.f32 %v2394, %v2529
      %v2531 = vpop.f32.mrb[0].mxu0
      %v2532 = vpop.f32.mrb[0].mxu0
      %v2533 = vadd.f32 %v2397, %v2532
      %v2534 = vpop.f32.mrb[0].mxu0
      %2535 = vmatprep.mubr.bf16.mxu0 %v2309
      %2536 = vmatmul.mubr.bf16.gmra.mrb[0].mxu0 %v2222
      %v2537 = vpop.f32.mrb[0].mxu0
      %v2538 = vadd.f32 %v2402, %v2537
      %v2539 = vpop.f32.mrb[0].mxu0
      %v2540 = vpop.f32.mrb[0].mxu0
      %v2541 = vadd.f32 %v2405, %v2540
      %v2542 = vpop.f32.mrb[0].mxu0
      %2543 = vmatprep.mubr.bf16.mxu0 %v2312
      %2544 = vmatmul.mubr.bf16.gmra.mrb[0].mxu0 %v2226
      %v2545 = vpop.f32.mrb[0].mxu0
      %v2546 = vadd.f32 %v2410, %v2545
      %v2547 = vpop.f32.mrb[0].mxu0
      %v2548 = vpop.f32.mrb[0].mxu0
      %v2549 = vadd.f32 %v2413, %v2548
      %v2550 = vpop.f32.mrb[0].mxu0
      %2551 = vmatprep.mubr.bf16.mxu0 %v2315
      %2552 = vmatmul.mubr.bf16.gmra.mrb[0].mxu0 %v2230
      %v2553 = vpop.f32.mrb[0].mxu0
      %v2554 = vadd.f32 %v2418, %v2553
      %v2555 = vpop.f32.mrb[0].mxu0
      %v2556 = vpop.f32.mrb[0].mxu0
      %v2557 = vadd.f32 %v2421, %v2556
      %v2558 = vpop.f32.mrb[0].mxu0
      %2559 = vmatprep.mubr.bf16.mxu0 %v2318
      %2560 = vmatmul.mubr.bf16.gmra.mrb[0].mxu0 %v2234
      %v2561 = vpop.f32.mrb[0].mxu0
      %v2562 = vadd.f32 %v2426, %v2561
      %v2563 = vpop.f32.mrb[0].mxu0
      %v2564 = vpop.f32.mrb[0].mxu0
      %v2565 = vadd.f32 %v2429, %v2564
      %v2566 = vpop.f32.mrb[0].mxu0
      %2567 = vmatprep.mubr.bf16.mxu0 %v2321
      %2568 = vmatmul.mubr.bf16.gmra.mrb[0].mxu0 %v2238
      %v2569 = vpop.f32.mrb[0].mxu0
      %v2570 = vadd.f32 %v2434, %v2569
      %v2571 = vpop.f32.mrb[0].mxu0
      %v2572 = vpop.f32.mrb[0].mxu0
      %v2573 = vadd.f32 %v2437, %v2572
      %v2574 = vpop.f32.mrb[0].mxu0
      %2575 = vmatprep.mubr.bf16.mxu0 %v2324
      %2576 = vmatmul.mubr.bf16.gmra.mrb[0].mxu0 %v2242
      %v2577 = vpop.f32.mrb[0].mxu0
      %v2578 = vadd.f32 %v2442, %v2577
      %v2579 = vpop.f32.mrb[0].mxu0
      %v2580 = vpop.f32.mrb[0].mxu0
      %v2581 = vadd.f32 %v2445, %v2580
      %v2582 = vpop.f32.mrb[0].mxu0
      %2583 = vmatprep.mubr.bf16.mxu0 %v2327
      %2584 = vmatmul.mubr.bf16.gmra.mrb[0].mxu0 %v2246
      %v2585 = vpop.f32.mrb[0].mxu0
      %v2586 = vadd.f32 %v2450, %v2585
      %v2587 = vpop.f32.mrb[0].mxu0
      %v2588 = vpop.f32.mrb[0].mxu0
      %v2589 = vadd.f32 %v2453, %v2588
      %v2590 = vpop.f32.mrb[0].mxu0
      %2591 = vmatprep.mubr.bf16.mxu0 %v2330
      %2592 = vmatmul.mubr.bf16.gmra.mrb[0].mxu0 %v2250
      %v2593 = vpop.f32.mrb[0].mxu0
      %v2594 = vadd.f32 %v2458, %v2593
      %v2595 = vpop.f32.mrb[0].mxu0
      %v2596 = vpop.f32.mrb[0].mxu0
      %v2597 = vadd.f32 %v2461, %v2596
      %v2598 = vpop.f32.mrb[0].mxu0
      %2599 = vmatprep.mubr.bf16.mxu0 %v2333
      %2600 = vmatmul.mubr.bf16.gmra.mrb[0].mxu0 %v2254
      %v2601 = vpop.f32.mrb[0].mxu0
      %v2602 = vadd.f32 %v2466, %v2601
      %v2603 = vpop.f32.mrb[0].mxu0
      %v2604 = vpop.f32.mrb[0].mxu0
      %v2605 = vpop.f32.mrb[0].mxu0
      %2606 = vdwg.mxu0
      %2607 = vst.msk [vmem:[%s175] sm:$0xff] %vm228, %v2506
      %2608 = vst.msk [vmem:[%s175 + $0x8] sm:$0xff] %vm228, %v2509
      %2609 = vst.msk [vmem:[%s175 + $0x10] sm:$0xff] %vm228, %v2514
      %2610 = vst.msk [vmem:[%s175 + $0x18] sm:$0xff] %vm228, %v2517
      %2611 = vst.msk [vmem:[%s175 + $0x20] sm:$0xff] %vm228, %v2522
      %2612 = vst.msk [vmem:[%s175 + $0x28] sm:$0xff] %vm228, %v2525
      %2613 = vst.msk [vmem:[%s175 + $0x30] sm:$0xff] %vm228, %v2530
      %2614 = vst.msk [vmem:[%s175 + $0x38] sm:$0xff] %vm228, %v2533
      %2615 = vst.msk [vmem:[%s175 + $0x40] sm:$0xff] %vm228, %v2538
      %2616 = vst.msk [vmem:[%s175 + $0x48] sm:$0xff] %vm228, %v2541
      %2617 = vst.msk [vmem:[%s175 + $0x50] sm:$0xff] %vm228, %v2546
      %2618 = vst.msk [vmem:[%s175 + $0x58] sm:$0xff] %vm228, %v2549
      %2619 = vst.msk [vmem:[%s175 + $0x60] sm:$0xff] %vm228, %v2554
      %2620 = vst.msk [vmem:[%s175 + $0x68] sm:$0xff] %vm228, %v2557
      %2621 = vst.msk [vmem:[%s175 + $0x70] sm:$0xff] %vm228, %v2562
      %2622 = vst.msk [vmem:[%s175 + $0x78] sm:$0xff] %vm228, %v2565
      %2623 = vst.msk [vmem:[%s175 + $0x80] sm:$0xff] %vm228, %v2570
      %2624 = vst.msk [vmem:[%s175 + $0x88] sm:$0xff] %vm228, %v2573
      %2625 = vst.msk [vmem:[%s175 + $0x90] sm:$0xff] %vm228, %v2578
      %2626 = vst.msk [vmem:[%s175 + $0x98] sm:$0xff] %vm228, %v2581
      %2627 = vst.msk [vmem:[%s175 + $0xa0] sm:$0xff] %vm228, %v2586
      %2628 = vst.msk [vmem:[%s175 + $0xa8] sm:$0xff] %vm228, %v2589
      %2629 = vst.msk [vmem:[%s175 + $0xb0] sm:$0xff] %vm228, %v2594
      %2630 = vst.msk [vmem:[%s175 + $0xb8] sm:$0xff] %vm228, %v2597
      %2631 = vst.msk [vmem:[%s175 + $0xc0] sm:$0xff] %vm228, %v2602
      %s2632 = smul.u32 25, %s14
      %p2633 = scmp.lt.s32.totalorder %s2632, 49
      %s2634 = scalar_select %p2633, %s2632, 49
      %s2635 = smul.addr %s2634, 8
      %s2636 = scalar_lea.vmem %s3, %s2635
      // Predicated region
      $region33: #{tpu_custom_call.1} parent=31 // pred_check
        %p2637 = pneg %p100
      $region34: #{tpu_custom_call.1} parent=31 // pred_check_branch
        %2639 = sbr.rel (%p2637) target = $region36
      $region35: #{tpu_custom_call.1} parent=31 // pred_region
        %s2640 = smul.u32 25, %s14
      $region36: #{tpu_custom_call.1} parent=31 // pred_fallthru
        _
    $region32: #{tpu_custom_call.1} parent=5 // pred_fallthru
      _
    %p2641 = scmp.le.s32.totalorder 2, %s9
    // Predicated region
    $region37: #{tpu_custom_call.1} parent=5 // pred_check
      %p2642 = pneg %p2641
    $region38: #{tpu_custom_call.1} parent=5 // pred_check_branch
      %2644 = sbr.rel (%p2642) target = $region40
    $region39: #{tpu_custom_call.1} parent=5 // pred_region
      %s2645 = ssub.s32 %s9, 2
      // Predicated region
      $region41: #{tpu_custom_call.1} parent=39 // pred_check
        %p2646 = pneg %p106
      $region42: #{tpu_custom_call.1} parent=39 // pred_check_branch
        %2648 = sbr.rel (%p2646) target = $region44
      $region43: #{tpu_custom_call.1} parent=39 // pred_region
        %s2649 = smul.u32 25, %s15
        %p2650 = scmp.lt.s32.totalorder %s2649, 49
        %s2651 = scalar_select %p2650, %s2649, 49
        %s2652 = smul.addr %s2651, 8
        %s2653 = scalar_lea.vmem %s3, %s2652
      $region44: #{tpu_custom_call.1} parent=39 // pred_fallthru
        _
    $region40: #{tpu_custom_call.1} parent=5 // pred_fallthru
      _
  $region6: #{tpu_custom_call.1} parent=0 // loop_footer
    %s13 = sadd.s32 1, %s9
  $region7: #{tpu_custom_call.1} parent=0 // loop_footer_branch
    %8 = sbr.rel target = $region3
  $region8: #{tpu_custom_call.1} parent=0 // loop_exit
    _

</llo_original>
